<compile_context>
chip_gen: v7x
topology: tpu7x:2x2x1
jax: 0.10.0
libtpu: 0.0.40
codegen_flags: <defaults>
</compile_context>

<pallas_src>
import jax
import jax.numpy as jnp
from jax.experimental import pallas as pl
from jax.experimental.pallas import tpu as pltpu


def _round_up(n, m):
    return ((n + m - 1) // m) * m


# ---------------------------------------------------------------------------
# Fused kernel builder
# ---------------------------------------------------------------------------
def _build_fused_kernel(*, use_ffn, use_item_bias, use_user_bias,
                        tile_b, cu, ci, nu, ni, compute_dtype):
    """Fused gather + FFN + chunk-maxpool + dot(+bias) kernel."""

    def kernel(uids_ref, iids_ref, *refs):
        # ----- unpack positional refs (inputs, output, scratch) -----------
        it = iter(refs)
        utbl_ref = next(it)            # (cu*nu, D)  HBM (pl.ANY)
        itbl_ref = next(it)            # (ci*ni, D)  HBM (pl.ANY)
        if use_ffn:
            wu1_ref = next(it); bu1_ref = next(it)
            wu2_ref = next(it); bu2_ref = next(it)
            wi1_ref = next(it); bi1_ref = next(it)
            wi2_ref = next(it); bi2_ref = next(it)
        ib_ref = next(it) if use_item_bias else None
        ub_ref = next(it) if use_user_bias else None
        out_ref = next(it)             # (tile_b, 1)
        ubuf = next(it)                # VMEM (cu*tile_b, D) f32
        ibuf = next(it)                # VMEM (ci*tile_b, D) f32
        sem = next(it)                 # DMA semaphores, shape (2,)

        base = pl.program_id(0) * tile_b

        # ----- issue all gather DMAs (user -> sem[0], item -> sem[1]) -----
        # Rows land at c*tile_b + r, i.e. already in the "chunks folded into
        # matmul-M" layout.
        @pl.loop(0, tile_b)
        def _issue(r):
            uid = uids_ref[base + r]
            for c in range(cu):
                pltpu.make_async_copy(
                    utbl_ref.at[pl.ds(c * nu + uid, 1), :],
                    ubuf.at[pl.ds(c * tile_b + r, 1), :],
                    sem.at[0]).start()
            iid = iids_ref[base + r]
            for c in range(ci):
                pltpu.make_async_copy(
                    itbl_ref.at[pl.ds(c * ni + iid, 1), :],
                    ibuf.at[pl.ds(c * tile_b + r, 1), :],
                    sem.at[1]).start()

        def _ffn(x, w1_ref, b1_ref, w2_ref, b2_ref):
            h = jnp.dot(x.astype(compute_dtype), w1_ref[...],
                        preferred_element_type=jnp.float32) + b1_ref[...]
            h = jnp.maximum(h, 0.0)                                   # ReLU (f32)
            return jnp.dot(h.astype(compute_dtype), w2_ref[...],
                           preferred_element_type=jnp.float32) + b2_ref[...]

        def _chunk_max(y, n_chunks):
            rep = y[0:tile_b]
            for c in range(1, n_chunks):
                rep = jnp.maximum(rep, y[c * tile_b:(c + 1) * tile_b])
            return rep

        # ----- user branch (wait its DMAs, then compute) -------------------
        @pl.loop(0, tile_b)
        def _wait_user(r):
            uid = uids_ref[base + r]
            for c in range(cu):
                pltpu.make_async_copy(
                    utbl_ref.at[pl.ds(c * nu + uid, 1), :],
                    ubuf.at[pl.ds(c * tile_b + r, 1), :],
                    sem.at[0]).wait()

        xu = ubuf[...]
        yu = _ffn(xu, wu1_ref, bu1_ref, wu2_ref, bu2_ref) if use_ffn else xu
        u_rep = _chunk_max(yu, cu)

        # ----- item branch (its DMAs overlapped with the user compute) -----
        @pl.loop(0, tile_b)
        def _wait_item(r):
            iid = iids_ref[base + r]
            for c in range(ci):
                pltpu.make_async_copy(
                    itbl_ref.at[pl.ds(c * ni + iid, 1), :],
                    ibuf.at[pl.ds(c * tile_b + r, 1), :],
                    sem.at[1]).wait()

        xi = ibuf[...]
        yi = _ffn(xi, wi1_ref, bi1_ref, wi2_ref, bi2_ref) if use_ffn else xi
        i_rep = _chunk_max(yi, ci)

        # ----- epilogue: dot product + biases, single store ----------------
        res = jnp.sum(u_rep * i_rep, axis=1, keepdims=True)
        if use_item_bias:
            res = res + ib_ref[...]
        if use_user_bias:
            res = res + ub_ref[...]
        out_ref[...] = res

    return kernel


# ---------------------------------------------------------------------------
# Module (parameter container + forward glue)
# ---------------------------------------------------------------------------
class ClassifierUserItemPrecalcAggChunks:
    """JAX/Pallas re-implementation of the PyTorch module's forward pass.

    chunk_agg_strategy == 'max_pool' (the only strategy implemented upstream;
    missing chunks are filled with chunk-0's rep upstream, which is a no-op
    under max-pooling). Precomputed chunk representations are synthesized
    deterministically instead of being loaded from pickled BERT outputs.
    """

    def __init__(self, key, *, n_users, n_items, max_num_chunks_user,
                 max_num_chunks_item, bert_embedding_dim=768, k1=64, k2=32,
                 use_ffn=True, use_item_bias=False, use_user_bias=False,
                 compute_dtype=jnp.bfloat16, batch_tile=128):
        self.use_ffn = use_ffn
        self.use_item_bias = use_item_bias
        self.use_user_bias = use_user_bias
        self.compute_dtype = compute_dtype
        self.batch_tile = int(batch_tile)
        self.d = bert_embedding_dim
        self.cu = max_num_chunks_user
        self.ci = max_num_chunks_item
        self.nu = n_users
        self.ni = n_items
        self.k1, self.k2 = k1, k2

        keys = jax.random.split(key, 8)
        # Precomputed chunk representations: (C, N, D) float32.
        self.chunk_user_reps = jax.random.normal(
            keys[0], (max_num_chunks_user, n_users, bert_embedding_dim), jnp.float32)
        self.chunk_item_reps = jax.random.normal(
            keys[1], (max_num_chunks_item, n_items, bert_embedding_dim), jnp.float32)
        # Row-gatherable layout (C*N, D) for the in-kernel DMA gather.
        self._user_tbl = self.chunk_user_reps.reshape(
            max_num_chunks_user * n_users, bert_embedding_dim)
        self._item_tbl = self.chunk_item_reps.reshape(
            max_num_chunks_item * n_items, bert_embedding_dim)

        if use_ffn:
            def linear_init(k, fan_in, fan_out):
                kw, kb = jax.random.split(k)
                bound = 1.0 / (fan_in ** 0.5)
                w = jax.random.uniform(kw, (fan_in, fan_out), jnp.float32, -bound, bound)
                b = jax.random.uniform(kb, (fan_out,), jnp.float32, -bound, bound)
                return w, b

            self.w_u1, self.b_u1 = linear_init(keys[2], bert_embedding_dim, k1)
            self.w_i1, self.b_i1 = linear_init(keys[3], bert_embedding_dim, k1)
            self.w_u2, self.b_u2 = linear_init(keys[4], k1, k2)
            self.w_i2, self.b_i2 = linear_init(keys[5], k1, k2)

        # nn.Parameter(torch.zeros(...)) equivalents
        self.item_bias = jnp.zeros((n_items,), jnp.float32)
        self.user_bias = jnp.zeros((n_users,), jnp.float32)

    # ------------------------------------------------------------------ #
    def forward(self, user_ids, item_ids):
        """user_ids/item_ids: (B,) int -> (B, 1) scores."""
        B = int(user_ids.shape[0])
        tb = min(self.batch_tile, _round_up(B, 8))
        b_pad = _round_up(B, tb)
        num_tiles = b_pad // tb
        pad = b_pad - B
        uid_p = jnp.pad(user_ids.astype(jnp.int32), (0, pad))
        iid_p = jnp.pad(item_ids.astype(jnp.int32), (0, pad))

        cdt = self.compute_dtype
        full = lambda t, uids, iids: (0, 0)
        row_spec = pl.BlockSpec((tb, 1), lambda t, uids, iids: (t, 0))

        tensor_args = [self._user_tbl, self._item_tbl]
        in_specs = [pl.BlockSpec(memory_space=pl.ANY),
                    pl.BlockSpec(memory_space=pl.ANY)]
        if self.use_ffn:
            tensor_args += [
                self.w_u1.astype(cdt), self.b_u1.reshape(1, -1),
                self.w_u2.astype(cdt), self.b_u2.reshape(1, -1),
                self.w_i1.astype(cdt), self.b_i1.reshape(1, -1),
                self.w_i2.astype(cdt), self.b_i2.reshape(1, -1),
            ]
            in_specs += [
                pl.BlockSpec((self.d, self.k1), full),
                pl.BlockSpec((1, self.k1), full),
                pl.BlockSpec((self.k1, self.k2), full),
                pl.BlockSpec((1, self.k2), full),
                pl.BlockSpec((self.d, self.k1), full),
                pl.BlockSpec((1, self.k1), full),
                pl.BlockSpec((self.k1, self.k2), full),
                pl.BlockSpec((1, self.k2), full),
            ]
        if self.use_item_bias:
            tensor_args.append(self.item_bias[iid_p].reshape(b_pad, 1))
            in_specs.append(row_spec)
        if self.use_user_bias:
            tensor_args.append(self.user_bias[uid_p].reshape(b_pad, 1))
            in_specs.append(row_spec)

        kernel = _build_fused_kernel(
            use_ffn=self.use_ffn, use_item_bias=self.use_item_bias,
            use_user_bias=self.use_user_bias, tile_b=tb,
            cu=self.cu, ci=self.ci, nu=self.nu, ni=self.ni,
            compute_dtype=cdt)

        out = pl.pallas_call(
            kernel,
            out_shape=jax.ShapeDtypeStruct((b_pad, 1), jnp.float32),
            grid_spec=pltpu.PrefetchScalarGridSpec(
                num_scalar_prefetch=2,
                grid=(num_tiles,),
                in_specs=in_specs,
                out_specs=row_spec,
                scratch_shapes=[
                    pltpu.VMEM((self.cu * tb, self.d), jnp.float32),
                    pltpu.VMEM((self.ci * tb, self.d), jnp.float32),
                    pltpu.SemaphoreType.DMA((2,)),
                ]),
            compiler_params=pltpu.CompilerParams(
                dimension_semantics=("parallel",)),
        )(uid_p, iid_p, *tensor_args)
        return out[:B]

    # Pure-JAX reference (f32) for correctness checking.
    def forward_ref(self, user_ids, item_ids):
        user_chunks = jnp.take(self.chunk_user_reps, user_ids, axis=1)   # (Cu,B,D)
        item_chunks = jnp.take(self.chunk_item_reps, item_ids, axis=1)   # (Ci,B,D)
        if self.use_ffn:
            u = jax.nn.relu(user_chunks @ self.w_u1 + self.b_u1) @ self.w_u2 + self.b_u2
            i = jax.nn.relu(item_chunks @ self.w_i1 + self.b_i1) @ self.w_i2 + self.b_i2
        else:
            u, i = user_chunks, item_chunks
        u = jnp.max(u, axis=0)
        i = jnp.max(i, axis=0)
        res = jnp.sum(u * i, axis=1)
        if self.use_item_bias:
            res = res + self.item_bias[item_ids]
        if self.use_user_bias:
            res = res + self.user_bias[user_ids]
        return res[:, None]


# ---------------------------------------------------------------------------
if __name__ == "__main__":
    key = jax.random.PRNGKey(0)
    k_model, k_u, k_i, k_ib, k_ub = jax.random.split(key, 5)

    n_users, n_items = 10, 12
    cu, ci = 3, 2

    # --- Config 1: FFN + both biases, bf16 matmul inputs (bf16-native MXU) --
    B = 8
    user_ids = jax.random.randint(k_u, (B,), 0, n_users, dtype=jnp.int32)
    item_ids = jax.random.randint(k_i, (B,), 0, n_items, dtype=jnp.int32)

    model = ClassifierUserItemPrecalcAggChunks(
        k_model, n_users=n_users, n_items=n_items,
        max_num_chunks_user=cu, max_num_chunks_item=ci,
        bert_embedding_dim=768, k1=64, k2=32,
        use_ffn=True, use_item_bias=True, use_user_bias=True,
        compute_dtype=jnp.bfloat16)
    # Give the (zero-initialized) bias parameters non-trivial values so the
    # bias paths are actually exercised.
    model.item_bias = 0.1 * jax.random.normal(k_ib, (n_items,), jnp.float32)
    model.user_bias = 0.1 * jax.random.normal(k_ub, (n_users,), jnp.float32)

    out = jax.block_until_ready(model.forward(user_ids, item_ids))
    ref = model.forward_ref(user_ids, item_ids)
    assert out.shape == (B, 1)
    assert jnp.allclose(out, ref, rtol=5e-2, atol=5e-2), (out, ref)

    # --- Config 2: FFN in full f32 (exact), odd batch exercises padding -----
    B2 = 6
    u2 = jax.random.randint(jax.random.PRNGKey(7), (B2,), 0, n_users, dtype=jnp.int32)
    i2 = jax.random.randint(jax.random.PRNGKey(11), (B2,), 0, n_items, dtype=jnp.int32)
    model_f32 = ClassifierUserItemPrecalcAggChunks(
        k_model, n_users=n_users, n_items=n_items,
        max_num_chunks_user=cu, max_num_chunks_item=ci,
        use_ffn=True, use_item_bias=True, use_user_bias=True,
        compute_dtype=jnp.float32)
    out2 = jax.block_until_ready(model_f32.forward(u2, i2))
    ref2 = model_f32.forward_ref(u2, i2)
    assert out2.shape == (B2, 1)
    assert jnp.allclose(out2, ref2, rtol=1e-4, atol=1e-4), (out2, ref2)

    # --- Config 3: use_ffn=False (max-pool raw 768-d chunk reps + dot) ------
    model_plain = ClassifierUserItemPrecalcAggChunks(
        k_model, n_users=n_users, n_items=n_items,
        max_num_chunks_user=cu, max_num_chunks_item=ci,
        use_ffn=False, use_item_bias=False, use_user_bias=False)
    out3 = jax.block_until_ready(model_plain.forward(user_ids, item_ids))
    ref3 = model_plain.forward_ref(user_ids, item_ids)
    assert out3.shape == (B, 1)
    assert jnp.allclose(out3, ref3, rtol=1e-4, atol=1e-4), (out3, ref3)

    print("KERNEL_OK")
</pallas_src>

<mosaic_0001>
module attributes {stable_mosaic.version = 11 : i64} {
  func.func @kernel(%arg0: i32, %arg1: memref<8xi32, #tpu.memory_space<smem>>, %arg2: memref<8xi32, #tpu.memory_space<smem>>, %arg3: memref<30x768xf32, #tpu.memory_space<any>>, %arg4: memref<24x768xf32, #tpu.memory_space<any>>, %arg5: memref<768x64xbf16, #tpu.memory_space<vmem>>, %arg6: memref<1x64xf32, #tpu.memory_space<vmem>>, %arg7: memref<64x32xbf16, #tpu.memory_space<vmem>>, %arg8: memref<1x32xf32, #tpu.memory_space<vmem>>, %arg9: memref<768x64xbf16, #tpu.memory_space<vmem>>, %arg10: memref<1x64xf32, #tpu.memory_space<vmem>>, %arg11: memref<64x32xbf16, #tpu.memory_space<vmem>>, %arg12: memref<1x32xf32, #tpu.memory_space<vmem>>, %arg13: memref<8x1xf32, #tpu.memory_space<vmem>>, %arg14: memref<8x1xf32, #tpu.memory_space<vmem>>, %arg15: memref<8x1xf32, #tpu.memory_space<vmem>>, %arg16: memref<24x768xf32, #tpu.memory_space<vmem>>, %arg17: memref<16x768xf32, #tpu.memory_space<vmem>>, %arg18: memref<2x!tpu.dma_semaphore, #tpu.memory_space<semaphore_mem>>) attributes {dimension_semantics = [#tpu.dimension_semantics<parallel>], iteration_bounds = array<i64: 1>, scalar_prefetch = 2 : i64, scratch_operands = 3 : i64, tpu.core_type = #tpu.core_type<tc>, window_params = [{}, {}, {pipeline_mode = #tpu.pipeline_mode<synchronous>, transform_indices = @transform_2, window_bounds = array<i64: 768, 64>}, {pipeline_mode = #tpu.pipeline_mode<synchronous>, transform_indices = @transform_3, window_bounds = array<i64: 1, 64>}, {pipeline_mode = #tpu.pipeline_mode<synchronous>, transform_indices = @transform_4, window_bounds = array<i64: 64, 32>}, {pipeline_mode = #tpu.pipeline_mode<synchronous>, transform_indices = @transform_5, window_bounds = array<i64: 1, 32>}, {pipeline_mode = #tpu.pipeline_mode<synchronous>, transform_indices = @transform_6, window_bounds = array<i64: 768, 64>}, {pipeline_mode = #tpu.pipeline_mode<synchronous>, transform_indices = @transform_7, window_bounds = array<i64: 1, 64>}, {pipeline_mode = #tpu.pipeline_mode<synchronous>, transform_indices = @transform_8, window_bounds = array<i64: 64, 32>}, {pipeline_mode = #tpu.pipeline_mode<synchronous>, transform_indices = @transform_9, window_bounds = array<i64: 1, 32>}, {transform_indices = @transform_10, window_bounds = array<i64: 8, 1>}, {transform_indices = @transform_11, window_bounds = array<i64: 8, 1>}, {transform_indices = @transform_12, window_bounds = array<i64: 8, 1>}]} {
    %c8_i32 = arith.constant 8 : i32
    %0 = arith.muli %arg0, %c8_i32 : i32
    %c0_i32 = arith.constant 0 : i32
    %c8_i32_0 = arith.constant 8 : i32
    %1 = arith.addi %c0_i32, %c8_i32_0 : i32
    %c1_i32 = arith.constant 1 : i32
    scf.for %arg19 = %c0_i32 to %1 step %c1_i32  : i32 {
      %c1_i32_41 = arith.constant 1 : i32
      %50 = arith.muli %arg19, %c1_i32_41 : i32
      %c0_i32_42 = arith.constant 0 : i32
      %51 = arith.addi %c0_i32_42, %50 : i32
      %52 = arith.addi %0, %51 : i32
      %53 = arith.index_cast %52 : i32 to index
      %54 = memref.load %arg1[%53] : memref<8xi32, #tpu.memory_space<smem>>
      %c0_i32_43 = arith.constant 0 : i32
      %55 = arith.addi %c0_i32_43, %54 : i32
      %c0_i32_44 = arith.constant 0 : i32
      %56 = arith.addi %c0_i32_44, %51 : i32
      %c0_i32_45 = arith.constant 0 : i32
      %c0_i32_46 = arith.constant 0 : i32
      %57 = tpu.memref_slice %arg3[%55, %c0_i32_46] : memref<30x768xf32, #tpu.memory_space<any>> -> memref<1x768xf32, #tpu.memory_space<any>>
      %c0_i32_47 = arith.constant 0 : i32
      %58 = tpu.memref_slice %arg16[%56, %c0_i32_47] : memref<24x768xf32, #tpu.memory_space<vmem>> -> memref<1x768xf32, #tpu.memory_space<vmem>>
      %59 = tpu.memref_slice %arg18[%c0_i32_45] : memref<2x!tpu.dma_semaphore, #tpu.memory_space<semaphore_mem>> -> memref<1x!tpu.dma_semaphore, #tpu.memory_space<semaphore_mem>>
      %60 = tpu.memref_squeeze %59 : memref<1x!tpu.dma_semaphore, #tpu.memory_space<semaphore_mem>> -> memref<!tpu.dma_semaphore, #tpu.memory_space<semaphore_mem>>
      tpu.enqueue_dma source(%57 : memref<1x768xf32, #tpu.memory_space<any>>) target(%58 : memref<1x768xf32, #tpu.memory_space<vmem>>) target_semaphore(%60 : memref<!tpu.dma_semaphore, #tpu.memory_space<semaphore_mem>>)
      %c10_i32 = arith.constant 10 : i32
      %61 = arith.addi %c10_i32, %54 : i32
      %c8_i32_48 = arith.constant 8 : i32
      %62 = arith.addi %c8_i32_48, %51 : i32
      %c0_i32_49 = arith.constant 0 : i32
      %c0_i32_50 = arith.constant 0 : i32
      %63 = tpu.memref_slice %arg3[%61, %c0_i32_50] : memref<30x768xf32, #tpu.memory_space<any>> -> memref<1x768xf32, #tpu.memory_space<any>>
      %c0_i32_51 = arith.constant 0 : i32
      %64 = tpu.memref_slice %arg16[%62, %c0_i32_51] : memref<24x768xf32, #tpu.memory_space<vmem>> -> memref<1x768xf32, #tpu.memory_space<vmem>>
      %65 = tpu.memref_slice %arg18[%c0_i32_49] : memref<2x!tpu.dma_semaphore, #tpu.memory_space<semaphore_mem>> -> memref<1x!tpu.dma_semaphore, #tpu.memory_space<semaphore_mem>>
      %66 = tpu.memref_squeeze %65 : memref<1x!tpu.dma_semaphore, #tpu.memory_space<semaphore_mem>> -> memref<!tpu.dma_semaphore, #tpu.memory_space<semaphore_mem>>
      tpu.enqueue_dma source(%63 : memref<1x768xf32, #tpu.memory_space<any>>) target(%64 : memref<1x768xf32, #tpu.memory_space<vmem>>) target_semaphore(%66 : memref<!tpu.dma_semaphore, #tpu.memory_space<semaphore_mem>>)
      %c20_i32 = arith.constant 20 : i32
      %67 = arith.addi %c20_i32, %54 : i32
      %c16_i32 = arith.constant 16 : i32
      %68 = arith.addi %c16_i32, %51 : i32
      %c0_i32_52 = arith.constant 0 : i32
      %c0_i32_53 = arith.constant 0 : i32
      %69 = tpu.memref_slice %arg3[%67, %c0_i32_53] : memref<30x768xf32, #tpu.memory_space<any>> -> memref<1x768xf32, #tpu.memory_space<any>>
      %c0_i32_54 = arith.constant 0 : i32
      %70 = tpu.memref_slice %arg16[%68, %c0_i32_54] : memref<24x768xf32, #tpu.memory_space<vmem>> -> memref<1x768xf32, #tpu.memory_space<vmem>>
      %71 = tpu.memref_slice %arg18[%c0_i32_52] : memref<2x!tpu.dma_semaphore, #tpu.memory_space<semaphore_mem>> -> memref<1x!tpu.dma_semaphore, #tpu.memory_space<semaphore_mem>>
      %72 = tpu.memref_squeeze %71 : memref<1x!tpu.dma_semaphore, #tpu.memory_space<semaphore_mem>> -> memref<!tpu.dma_semaphore, #tpu.memory_space<semaphore_mem>>
      tpu.enqueue_dma source(%69 : memref<1x768xf32, #tpu.memory_space<any>>) target(%70 : memref<1x768xf32, #tpu.memory_space<vmem>>) target_semaphore(%72 : memref<!tpu.dma_semaphore, #tpu.memory_space<semaphore_mem>>)
      %73 = arith.addi %0, %51 : i32
      %74 = arith.index_cast %73 : i32 to index
      %75 = memref.load %arg2[%74] : memref<8xi32, #tpu.memory_space<smem>>
      %c0_i32_55 = arith.constant 0 : i32
      %76 = arith.addi %c0_i32_55, %75 : i32
      %c0_i32_56 = arith.constant 0 : i32
      %77 = arith.addi %c0_i32_56, %51 : i32
      %c1_i32_57 = arith.constant 1 : i32
      %c0_i32_58 = arith.constant 0 : i32
      %78 = tpu.memref_slice %arg4[%76, %c0_i32_58] : memref<24x768xf32, #tpu.memory_space<any>> -> memref<1x768xf32, #tpu.memory_space<any>>
      %c0_i32_59 = arith.constant 0 : i32
      %79 = tpu.memref_slice %arg17[%77, %c0_i32_59] : memref<16x768xf32, #tpu.memory_space<vmem>> -> memref<1x768xf32, #tpu.memory_space<vmem>>
      %80 = tpu.memref_slice %arg18[%c1_i32_57] : memref<2x!tpu.dma_semaphore, #tpu.memory_space<semaphore_mem>> -> memref<1x!tpu.dma_semaphore, #tpu.memory_space<semaphore_mem>>
      %81 = tpu.memref_squeeze %80 : memref<1x!tpu.dma_semaphore, #tpu.memory_space<semaphore_mem>> -> memref<!tpu.dma_semaphore, #tpu.memory_space<semaphore_mem>>
      tpu.enqueue_dma source(%78 : memref<1x768xf32, #tpu.memory_space<any>>) target(%79 : memref<1x768xf32, #tpu.memory_space<vmem>>) target_semaphore(%81 : memref<!tpu.dma_semaphore, #tpu.memory_space<semaphore_mem>>)
      %c12_i32 = arith.constant 12 : i32
      %82 = arith.addi %c12_i32, %75 : i32
      %c8_i32_60 = arith.constant 8 : i32
      %83 = arith.addi %c8_i32_60, %51 : i32
      %c1_i32_61 = arith.constant 1 : i32
      %c0_i32_62 = arith.constant 0 : i32
      %84 = tpu.memref_slice %arg4[%82, %c0_i32_62] : memref<24x768xf32, #tpu.memory_space<any>> -> memref<1x768xf32, #tpu.memory_space<any>>
      %c0_i32_63 = arith.constant 0 : i32
      %85 = tpu.memref_slice %arg17[%83, %c0_i32_63] : memref<16x768xf32, #tpu.memory_space<vmem>> -> memref<1x768xf32, #tpu.memory_space<vmem>>
      %86 = tpu.memref_slice %arg18[%c1_i32_61] : memref<2x!tpu.dma_semaphore, #tpu.memory_space<semaphore_mem>> -> memref<1x!tpu.dma_semaphore, #tpu.memory_space<semaphore_mem>>
      %87 = tpu.memref_squeeze %86 : memref<1x!tpu.dma_semaphore, #tpu.memory_space<semaphore_mem>> -> memref<!tpu.dma_semaphore, #tpu.memory_space<semaphore_mem>>
      tpu.enqueue_dma source(%84 : memref<1x768xf32, #tpu.memory_space<any>>) target(%85 : memref<1x768xf32, #tpu.memory_space<vmem>>) target_semaphore(%87 : memref<!tpu.dma_semaphore, #tpu.memory_space<semaphore_mem>>)
    }
    %c8_i32_1 = arith.constant 8 : i32
    %c0_i32_2 = arith.constant 0 : i32
    %c8_i32_3 = arith.constant 8 : i32
    %2 = arith.addi %c0_i32_2, %c8_i32_3 : i32
    %c1_i32_4 = arith.constant 1 : i32
    scf.for %arg19 = %c0_i32_2 to %2 step %c1_i32_4  : i32 {
      %c1_i32_41 = arith.constant 1 : i32
      %50 = arith.muli %arg19, %c1_i32_41 : i32
      %c0_i32_42 = arith.constant 0 : i32
      %51 = arith.addi %c0_i32_42, %50 : i32
      %52 = arith.addi %0, %51 : i32
      %53 = arith.index_cast %52 : i32 to index
      %54 = memref.load %arg1[%53] : memref<8xi32, #tpu.memory_space<smem>>
      %c0_i32_43 = arith.constant 0 : i32
      %55 = arith.addi %c0_i32_43, %54 : i32
      %c0_i32_44 = arith.constant 0 : i32
      %56 = arith.addi %c0_i32_44, %51 : i32
      %c0_i32_45 = arith.constant 0 : i32
      %c0_i32_46 = arith.constant 0 : i32
      %57 = tpu.memref_slice %arg3[%55, %c0_i32_46] : memref<30x768xf32, #tpu.memory_space<any>> -> memref<1x768xf32, #tpu.memory_space<any>>
      %c0_i32_47 = arith.constant 0 : i32
      %58 = tpu.memref_slice %arg16[%56, %c0_i32_47] : memref<24x768xf32, #tpu.memory_space<vmem>> -> memref<1x768xf32, #tpu.memory_space<vmem>>
      %59 = tpu.memref_slice %arg18[%c0_i32_45] : memref<2x!tpu.dma_semaphore, #tpu.memory_space<semaphore_mem>> -> memref<1x!tpu.dma_semaphore, #tpu.memory_space<semaphore_mem>>
      %60 = tpu.memref_squeeze %59 : memref<1x!tpu.dma_semaphore, #tpu.memory_space<semaphore_mem>> -> memref<!tpu.dma_semaphore, #tpu.memory_space<semaphore_mem>>
      tpu.wait_dma2 semaphore(%60 : memref<!tpu.dma_semaphore, #tpu.memory_space<semaphore_mem>>) src(%57 : memref<1x768xf32, #tpu.memory_space<any>>) dst(%58 : memref<1x768xf32, #tpu.memory_space<vmem>>)
      %c10_i32 = arith.constant 10 : i32
      %61 = arith.addi %c10_i32, %54 : i32
      %c8_i32_48 = arith.constant 8 : i32
      %62 = arith.addi %c8_i32_48, %51 : i32
      %c0_i32_49 = arith.constant 0 : i32
      %c0_i32_50 = arith.constant 0 : i32
      %63 = tpu.memref_slice %arg3[%61, %c0_i32_50] : memref<30x768xf32, #tpu.memory_space<any>> -> memref<1x768xf32, #tpu.memory_space<any>>
      %c0_i32_51 = arith.constant 0 : i32
      %64 = tpu.memref_slice %arg16[%62, %c0_i32_51] : memref<24x768xf32, #tpu.memory_space<vmem>> -> memref<1x768xf32, #tpu.memory_space<vmem>>
      %65 = tpu.memref_slice %arg18[%c0_i32_49] : memref<2x!tpu.dma_semaphore, #tpu.memory_space<semaphore_mem>> -> memref<1x!tpu.dma_semaphore, #tpu.memory_space<semaphore_mem>>
      %66 = tpu.memref_squeeze %65 : memref<1x!tpu.dma_semaphore, #tpu.memory_space<semaphore_mem>> -> memref<!tpu.dma_semaphore, #tpu.memory_space<semaphore_mem>>
      tpu.wait_dma2 semaphore(%66 : memref<!tpu.dma_semaphore, #tpu.memory_space<semaphore_mem>>) src(%63 : memref<1x768xf32, #tpu.memory_space<any>>) dst(%64 : memref<1x768xf32, #tpu.memory_space<vmem>>)
      %c20_i32 = arith.constant 20 : i32
      %67 = arith.addi %c20_i32, %54 : i32
      %c16_i32 = arith.constant 16 : i32
      %68 = arith.addi %c16_i32, %51 : i32
      %c0_i32_52 = arith.constant 0 : i32
      %c0_i32_53 = arith.constant 0 : i32
      %69 = tpu.memref_slice %arg3[%67, %c0_i32_53] : memref<30x768xf32, #tpu.memory_space<any>> -> memref<1x768xf32, #tpu.memory_space<any>>
      %c0_i32_54 = arith.constant 0 : i32
      %70 = tpu.memref_slice %arg16[%68, %c0_i32_54] : memref<24x768xf32, #tpu.memory_space<vmem>> -> memref<1x768xf32, #tpu.memory_space<vmem>>
      %71 = tpu.memref_slice %arg18[%c0_i32_52] : memref<2x!tpu.dma_semaphore, #tpu.memory_space<semaphore_mem>> -> memref<1x!tpu.dma_semaphore, #tpu.memory_space<semaphore_mem>>
      %72 = tpu.memref_squeeze %71 : memref<1x!tpu.dma_semaphore, #tpu.memory_space<semaphore_mem>> -> memref<!tpu.dma_semaphore, #tpu.memory_space<semaphore_mem>>
      tpu.wait_dma2 semaphore(%72 : memref<!tpu.dma_semaphore, #tpu.memory_space<semaphore_mem>>) src(%69 : memref<1x768xf32, #tpu.memory_space<any>>) dst(%70 : memref<1x768xf32, #tpu.memory_space<vmem>>)
    }
    %c8_i32_5 = arith.constant 8 : i32
    %c0 = arith.constant 0 : index
    %c0_6 = arith.constant 0 : index
    %3 = vector.load %arg16[%c0, %c0_6] : memref<24x768xf32, #tpu.memory_space<vmem>>, vector<24x768xf32>
    %4 = arith.truncf %3 : vector<24x768xf32> to vector<24x768xbf16>
    %c0_7 = arith.constant 0 : index
    %c0_8 = arith.constant 0 : index
    %5 = vector.load %arg5[%c0_7, %c0_8] : memref<768x64xbf16, #tpu.memory_space<vmem>>, vector<768x64xbf16>
    %cst = arith.constant dense<0.000000e+00> : vector<24x64xf32>
    %6 = tpu.matmul %4, %5, %cst {dimension_numbers = #tpu.dot_dimension_numbers<[1], [0], [0], [1], [0, 0, 1, 1], [], []>} : vector<24x768xbf16>, vector<768x64xbf16>, vector<24x64xf32> -> vector<24x64xf32>
    %c0_9 = arith.constant 0 : index
    %c0_10 = arith.constant 0 : index
    %7 = vector.load %arg6[%c0_9, %c0_10] : memref<1x64xf32, #tpu.memory_space<vmem>>, vector<1x64xf32>
    %8 = vector.broadcast %7 : vector<1x64xf32> to vector<24x64xf32>
    %9 = arith.addf %6, %8 : vector<24x64xf32>
    %cst_11 = arith.constant 0.000000e+00 : f32
    %10 = vector.broadcast %cst_11 : f32 to vector<24x64xf32>
    %11 = arith.maximumf %9, %10 : vector<24x64xf32>
    %12 = arith.truncf %11 : vector<24x64xf32> to vector<24x64xbf16>
    %c0_12 = arith.constant 0 : index
    %c0_13 = arith.constant 0 : index
    %13 = vector.load %arg7[%c0_12, %c0_13] : memref<64x32xbf16, #tpu.memory_space<vmem>>, vector<64x32xbf16>
    %cst_14 = arith.constant dense<0.000000e+00> : vector<24x32xf32>
    %14 = tpu.matmul %12, %13, %cst_14 {dimension_numbers = #tpu.dot_dimension_numbers<[1], [0], [0], [1], [0, 0, 1, 1], [], []>} : vector<24x64xbf16>, vector<64x32xbf16>, vector<24x32xf32> -> vector<24x32xf32>
    %c0_15 = arith.constant 0 : index
    %c0_16 = arith.constant 0 : index
    %15 = vector.load %arg8[%c0_15, %c0_16] : memref<1x32xf32, #tpu.memory_space<vmem>>, vector<1x32xf32>
    %16 = vector.broadcast %15 : vector<1x32xf32> to vector<24x32xf32>
    %17 = arith.addf %14, %16 : vector<24x32xf32>
    %18 = vector.extract_strided_slice %17 {offsets = [0, 0], sizes = [8, 32], strides = [1, 1]} : vector<24x32xf32> to vector<8x32xf32>
    %19 = vector.extract_strided_slice %17 {offsets = [8, 0], sizes = [8, 32], strides = [1, 1]} : vector<24x32xf32> to vector<8x32xf32>
    %20 = arith.maximumf %18, %19 : vector<8x32xf32>
    %21 = vector.extract_strided_slice %17 {offsets = [16, 0], sizes = [8, 32], strides = [1, 1]} : vector<24x32xf32> to vector<8x32xf32>
    %22 = arith.maximumf %20, %21 : vector<8x32xf32>
    %c0_i32_17 = arith.constant 0 : i32
    %c8_i32_18 = arith.constant 8 : i32
    %23 = arith.addi %c0_i32_17, %c8_i32_18 : i32
    %c1_i32_19 = arith.constant 1 : i32
    scf.for %arg19 = %c0_i32_17 to %23 step %c1_i32_19  : i32 {
      %c1_i32_41 = arith.constant 1 : i32
      %50 = arith.muli %arg19, %c1_i32_41 : i32
      %c0_i32_42 = arith.constant 0 : i32
      %51 = arith.addi %c0_i32_42, %50 : i32
      %52 = arith.addi %0, %51 : i32
      %53 = arith.index_cast %52 : i32 to index
      %54 = memref.load %arg2[%53] : memref<8xi32, #tpu.memory_space<smem>>
      %c0_i32_43 = arith.constant 0 : i32
      %55 = arith.addi %c0_i32_43, %54 : i32
      %c0_i32_44 = arith.constant 0 : i32
      %56 = arith.addi %c0_i32_44, %51 : i32
      %c1_i32_45 = arith.constant 1 : i32
      %c0_i32_46 = arith.constant 0 : i32
      %57 = tpu.memref_slice %arg4[%55, %c0_i32_46] : memref<24x768xf32, #tpu.memory_space<any>> -> memref<1x768xf32, #tpu.memory_space<any>>
      %c0_i32_47 = arith.constant 0 : i32
      %58 = tpu.memref_slice %arg17[%56, %c0_i32_47] : memref<16x768xf32, #tpu.memory_space<vmem>> -> memref<1x768xf32, #tpu.memory_space<vmem>>
      %59 = tpu.memref_slice %arg18[%c1_i32_45] : memref<2x!tpu.dma_semaphore, #tpu.memory_space<semaphore_mem>> -> memref<1x!tpu.dma_semaphore, #tpu.memory_space<semaphore_mem>>
      %60 = tpu.memref_squeeze %59 : memref<1x!tpu.dma_semaphore, #tpu.memory_space<semaphore_mem>> -> memref<!tpu.dma_semaphore, #tpu.memory_space<semaphore_mem>>
      tpu.wait_dma2 semaphore(%60 : memref<!tpu.dma_semaphore, #tpu.memory_space<semaphore_mem>>) src(%57 : memref<1x768xf32, #tpu.memory_space<any>>) dst(%58 : memref<1x768xf32, #tpu.memory_space<vmem>>)
      %c12_i32 = arith.constant 12 : i32
      %61 = arith.addi %c12_i32, %54 : i32
      %c8_i32_48 = arith.constant 8 : i32
      %62 = arith.addi %c8_i32_48, %51 : i32
      %c1_i32_49 = arith.constant 1 : i32
      %c0_i32_50 = arith.constant 0 : i32
      %63 = tpu.memref_slice %arg4[%61, %c0_i32_50] : memref<24x768xf32, #tpu.memory_space<any>> -> memref<1x768xf32, #tpu.memory_space<any>>
      %c0_i32_51 = arith.constant 0 : i32
      %64 = tpu.memref_slice %arg17[%62, %c0_i32_51] : memref<16x768xf32, #tpu.memory_space<vmem>> -> memref<1x768xf32, #tpu.memory_space<vmem>>
      %65 = tpu.memref_slice %arg18[%c1_i32_49] : memref<2x!tpu.dma_semaphore, #tpu.memory_space<semaphore_mem>> -> memref<1x!tpu.dma_semaphore, #tpu.memory_space<semaphore_mem>>
      %66 = tpu.memref_squeeze %65 : memref<1x!tpu.dma_semaphore, #tpu.memory_space<semaphore_mem>> -> memref<!tpu.dma_semaphore, #tpu.memory_space<semaphore_mem>>
      tpu.wait_dma2 semaphore(%66 : memref<!tpu.dma_semaphore, #tpu.memory_space<semaphore_mem>>) src(%63 : memref<1x768xf32, #tpu.memory_space<any>>) dst(%64 : memref<1x768xf32, #tpu.memory_space<vmem>>)
    }
    %c8_i32_20 = arith.constant 8 : i32
    %c0_21 = arith.constant 0 : index
    %c0_22 = arith.constant 0 : index
    %24 = vector.load %arg17[%c0_21, %c0_22] : memref<16x768xf32, #tpu.memory_space<vmem>>, vector<16x768xf32>
    %25 = arith.truncf %24 : vector<16x768xf32> to vector<16x768xbf16>
    %c0_23 = arith.constant 0 : index
    %c0_24 = arith.constant 0 : index
    %26 = vector.load %arg9[%c0_23, %c0_24] : memref<768x64xbf16, #tpu.memory_space<vmem>>, vector<768x64xbf16>
    %cst_25 = arith.constant dense<0.000000e+00> : vector<16x64xf32>
    %27 = tpu.matmul %25, %26, %cst_25 {dimension_numbers = #tpu.dot_dimension_numbers<[1], [0], [0], [1], [0, 0, 1, 1], [], []>} : vector<16x768xbf16>, vector<768x64xbf16>, vector<16x64xf32> -> vector<16x64xf32>
    %c0_26 = arith.constant 0 : index
    %c0_27 = arith.constant 0 : index
    %28 = vector.load %arg10[%c0_26, %c0_27] : memref<1x64xf32, #tpu.memory_space<vmem>>, vector<1x64xf32>
    %29 = vector.broadcast %28 : vector<1x64xf32> to vector<16x64xf32>
    %30 = arith.addf %27, %29 : vector<16x64xf32>
    %cst_28 = arith.constant 0.000000e+00 : f32
    %31 = vector.broadcast %cst_28 : f32 to vector<16x64xf32>
    %32 = arith.maximumf %30, %31 : vector<16x64xf32>
    %33 = arith.truncf %32 : vector<16x64xf32> to vector<16x64xbf16>
    %c0_29 = arith.constant 0 : index
    %c0_30 = arith.constant 0 : index
    %34 = vector.load %arg11[%c0_29, %c0_30] : memref<64x32xbf16, #tpu.memory_space<vmem>>, vector<64x32xbf16>
    %cst_31 = arith.constant dense<0.000000e+00> : vector<16x32xf32>
    %35 = tpu.matmul %33, %34, %cst_31 {dimension_numbers = #tpu.dot_dimension_numbers<[1], [0], [0], [1], [0, 0, 1, 1], [], []>} : vector<16x64xbf16>, vector<64x32xbf16>, vector<16x32xf32> -> vector<16x32xf32>
    %c0_32 = arith.constant 0 : index
    %c0_33 = arith.constant 0 : index
    %36 = vector.load %arg12[%c0_32, %c0_33] : memref<1x32xf32, #tpu.memory_space<vmem>>, vector<1x32xf32>
    %37 = vector.broadcast %36 : vector<1x32xf32> to vector<16x32xf32>
    %38 = arith.addf %35, %37 : vector<16x32xf32>
    %39 = vector.extract_strided_slice %38 {offsets = [0, 0], sizes = [8, 32], strides = [1, 1]} : vector<16x32xf32> to vector<8x32xf32>
    %40 = vector.extract_strided_slice %38 {offsets = [8, 0], sizes = [8, 32], strides = [1, 1]} : vector<16x32xf32> to vector<8x32xf32>
    %41 = arith.maximumf %39, %40 : vector<8x32xf32>
    %42 = arith.mulf %22, %41 : vector<8x32xf32>
    %cst_34 = arith.constant dense<0.000000e+00> : vector<8xf32>
    %43 = vector.multi_reduction <add>, %42, %cst_34 [1] : vector<8x32xf32> to vector<8xf32>
    %44 = vector.shape_cast %43 : vector<8xf32> to vector<8x1xf32>
    %c0_35 = arith.constant 0 : index
    %c0_36 = arith.constant 0 : index
    %45 = vector.load %arg13[%c0_35, %c0_36] : memref<8x1xf32, #tpu.memory_space<vmem>>, vector<8x1xf32>
    %46 = arith.addf %44, %45 : vector<8x1xf32>
    %c0_37 = arith.constant 0 : index
    %c0_38 = arith.constant 0 : index
    %47 = vector.load %arg14[%c0_37, %c0_38] : memref<8x1xf32, #tpu.memory_space<vmem>>, vector<8x1xf32>
    %48 = arith.addf %46, %47 : vector<8x1xf32>
    %c0_39 = arith.constant 0 : index
    %c0_40 = arith.constant 0 : index
    %49 = vector.load %arg15[%c0_39, %c0_40] : memref<8x1xf32, #tpu.memory_space<vmem>>, vector<8x1xf32>
    tpu.vector_store %arg15[%c0_39, %c0_40], %48 {strides = array<i32>} : memref<8x1xf32, #tpu.memory_space<vmem>>, vector<8x1xf32>,
    return
  }
  func.func @transform_2(%arg0: i32, %arg1: memref<8xi32, #tpu.memory_space<smem>>, %arg2: memref<8xi32, #tpu.memory_space<smem>>) -> (i32, i32) {
    %c0_i32 = arith.constant 0 : i32
    %c0_i32_0 = arith.constant 0 : i32
    %c0_i32_1 = arith.constant 0 : i32
    return %c0_i32, %c0_i32_0 : i32, i32
  }
  func.func @transform_3(%arg0: i32, %arg1: memref<8xi32, #tpu.memory_space<smem>>, %arg2: memref<8xi32, #tpu.memory_space<smem>>) -> (i32, i32) {
    %c0_i32 = arith.constant 0 : i32
    %c0_i32_0 = arith.constant 0 : i32
    %c0_i32_1 = arith.constant 0 : i32
    return %c0_i32, %c0_i32_0 : i32, i32
  }
  func.func @transform_4(%arg0: i32, %arg1: memref<8xi32, #tpu.memory_space<smem>>, %arg2: memref<8xi32, #tpu.memory_space<smem>>) -> (i32, i32) {
    %c0_i32 = arith.constant 0 : i32
    %c0_i32_0 = arith.constant 0 : i32
    %c0_i32_1 = arith.constant 0 : i32
    return %c0_i32, %c0_i32_0 : i32, i32
  }
  func.func @transform_5(%arg0: i32, %arg1: memref<8xi32, #tpu.memory_space<smem>>, %arg2: memref<8xi32, #tpu.memory_space<smem>>) -> (i32, i32) {
    %c0_i32 = arith.constant 0 : i32
    %c0_i32_0 = arith.constant 0 : i32
    %c0_i32_1 = arith.constant 0 : i32
    return %c0_i32, %c0_i32_0 : i32, i32
  }
  func.func @transform_6(%arg0: i32, %arg1: memref<8xi32, #tpu.memory_space<smem>>, %arg2: memref<8xi32, #tpu.memory_space<smem>>) -> (i32, i32) {
    %c0_i32 = arith.constant 0 : i32
    %c0_i32_0 = arith.constant 0 : i32
    %c0_i32_1 = arith.constant 0 : i32
    return %c0_i32, %c0_i32_0 : i32, i32
  }
  func.func @transform_7(%arg0: i32, %arg1: memref<8xi32, #tpu.memory_space<smem>>, %arg2: memref<8xi32, #tpu.memory_space<smem>>) -> (i32, i32) {
    %c0_i32 = arith.constant 0 : i32
    %c0_i32_0 = arith.constant 0 : i32
    %c0_i32_1 = arith.constant 0 : i32
    return %c0_i32, %c0_i32_0 : i32, i32
  }
  func.func @transform_8(%arg0: i32, %arg1: memref<8xi32, #tpu.memory_space<smem>>, %arg2: memref<8xi32, #tpu.memory_space<smem>>) -> (i32, i32) {
    %c0_i32 = arith.constant 0 : i32
    %c0_i32_0 = arith.constant 0 : i32
    %c0_i32_1 = arith.constant 0 : i32
    return %c0_i32, %c0_i32_0 : i32, i32
  }
  func.func @transform_9(%arg0: i32, %arg1: memref<8xi32, #tpu.memory_space<smem>>, %arg2: memref<8xi32, #tpu.memory_space<smem>>) -> (i32, i32) {
    %c0_i32 = arith.constant 0 : i32
    %c0_i32_0 = arith.constant 0 : i32
    %c0_i32_1 = arith.constant 0 : i32
    return %c0_i32, %c0_i32_0 : i32, i32
  }
  func.func @transform_10(%arg0: i32, %arg1: memref<8xi32, #tpu.memory_space<smem>>, %arg2: memref<8xi32, #tpu.memory_space<smem>>) -> (i32, i32) {
    %c0_i32 = arith.constant 0 : i32
    %c0_i32_0 = arith.constant 0 : i32
    return %arg0, %c0_i32 : i32, i32
  }
  func.func @transform_11(%arg0: i32, %arg1: memref<8xi32, #tpu.memory_space<smem>>, %arg2: memref<8xi32, #tpu.memory_space<smem>>) -> (i32, i32) {
    %c0_i32 = arith.constant 0 : i32
    %c0_i32_0 = arith.constant 0 : i32
    return %arg0, %c0_i32 : i32, i32
  }
  func.func @transform_12(%arg0: i32, %arg1: memref<8xi32, #tpu.memory_space<smem>>, %arg2: memref<8xi32, #tpu.memory_space<smem>>) -> (i32, i32) {
    %c0_i32 = arith.constant 0 : i32
    %c0_i32_0 = arith.constant 0 : i32
    return %arg0, %c0_i32 : i32, i32
  }
}

</mosaic_0001>

<llo_original>
// kernel: tpu_custom_call.1
$region0: #{tpu_custom_call.1}
  #allocation0 [shape = 'u32[]', space=smem, size = 0x4, offset = 0x4, fixed_abs, tag = 'smem constant byte address 0x4 - core index']
  #allocation1 [shape = 'u32[144,128]{1,0:T(1,128)}', space=vmem, size = 0x12000, scoped, tag = 'internal scratch']
  #allocation2 [shape = 'f32[24,768]{1,0:T(8,128)}', space=vmem, size = 0x12000, scoped, tag = 'scratch operand']
  #allocation3 [shape = 'f32[16,768]{1,0:T(8,128)}', space=vmem, size = 0xc000, scoped, tag = 'scratch operand']
  #allocation4 [shape = 's32[2]{0}', space=sflag, size = 0x8, scoped, tag = 'scratch operand']
  #allocation5 [shape = 's32[1]{0}', space=sflag, size = 0x4, scoped, tag = 'scoped memory for tpu_custom_call.1']
  #allocation6 [shape = 'u8[512]{0}', space=smem, size = 0x200, scoped, tag = 'prefetched SMEM operand 0']
  #allocation7 [shape = 'u8[512]{0}', space=smem, size = 0x200, scoped, tag = 'prefetched SMEM operand 1']
  #allocation8 [shape = 's32[]', space=sflag, size = 0x4, offset = 0, fixed_abs, tag = 'sflag constant byte address 0x0 - dummy sync flag']
  #allocation9 [shape = 's32[]', space=sflag, size = 0x4, offset = 0, fixed_abs, tag = 'sflag constant byte address 0x0 - dummy sync flag']
  #allocation10 [shape = 's32[]', space=sflag, size = 0x4, offset = 0, fixed_abs, tag = 'sflag constant byte address 0x0 - dummy sync flag']
  #allocation11 [shape = 's32[]', space=sflag, size = 0x4, offset = 0, fixed_abs, tag = 'sflag constant byte address 0x0 - dummy sync flag']
  #allocation12 [shape = 's32[]', space=sflag, size = 0x4, offset = 0, fixed_abs, tag = 'sflag constant byte address 0x0 - dummy sync flag']
  %s0 = inlined_call_operand.vmem [shape: s32[8], index: 0, kind: input, shape index: {}]
  %s1 = inlined_call_operand.vmem [shape: s32[8], index: 1, kind: input, shape index: {}]
  %s2 = inlined_call_operand.vmem [shape: f32[30,768], index: 2, kind: input, shape index: {}]
  %s3 = inlined_call_operand.vmem [shape: f32[24,768], index: 3, kind: input, shape index: {}]
  %s4 = inlined_call_operand.vmem [shape: bf16[768,64], index: 4, kind: input, shape index: {}]
  %s5 = inlined_call_operand.vmem [shape: f32[1,64], index: 5, kind: input, shape index: {}]
  %s6 = inlined_call_operand.vmem [shape: bf16[64,32], index: 6, kind: input, shape index: {}]
  %s7 = inlined_call_operand.vmem [shape: f32[1,32], index: 7, kind: input, shape index: {}]
  %s8 = inlined_call_operand.vmem [shape: bf16[768,64], index: 8, kind: input, shape index: {}]
  %s9 = inlined_call_operand.vmem [shape: f32[1,64], index: 9, kind: input, shape index: {}]
  %s10 = inlined_call_operand.vmem [shape: bf16[64,32], index: 10, kind: input, shape index: {}]
  %s11 = inlined_call_operand.vmem [shape: f32[1,32], index: 11, kind: input, shape index: {}]
  %s12 = inlined_call_operand.vmem [shape: f32[8,1], index: 12, kind: input, shape index: {}]
  %s13 = inlined_call_operand.vmem [shape: f32[8,1], index: 13, kind: input, shape index: {}]
  %s14 = inlined_call_operand.vmem [shape: f32[8,1], index: 14, kind: output, shape index: {}]
  %s15 = sld [smem:[#allocation0]]
  $region221: #{tpu_custom_call.1} parent=0
    _
  %s17 = ssub.s32 1, %s15
  %s18 = scalar_select 0, %s17, %s15
  %s19 = sshll.u32 %s0, 4
  %s20 = int_to_ptr.vmem [resolvable:$true] %s19
  %22 = dma.vmem_to_smem %s20, 16, [#allocation6], [#allocation5]
  %s23 = sshll.u32 %s1, 4
  %s24 = int_to_ptr.vmem [resolvable:$true] %s23
  %26 = dma.vmem_to_smem %s24, 16, [#allocation7], [#allocation5]
  %27 = dma.done [#allocation5], 32
  %28 = sfence
  // Predicated region
  $region2: #{tpu_custom_call.1} parent=0 // pred_check
    _
  $region3: #{tpu_custom_call.1} parent=0 // pred_check_branch
    %30 = sbr.rel (0) target = $region5
  $region4: #{tpu_custom_call.1} parent=0 // pred_region
    _
  $region5: #{tpu_custom_call.1} parent=0 // pred_fallthru
    _
  // Predicated region
  $region6: #{tpu_custom_call.1} parent=0 // pred_check
    _
  $region7: #{tpu_custom_call.1} parent=0 // pred_check_branch
    %32 = sbr.rel (0) target = $region9
  $region8: #{tpu_custom_call.1} parent=0 // pred_region
    _
  $region9: #{tpu_custom_call.1} parent=0 // pred_fallthru
    _
  // Predicated region
  $region10: #{tpu_custom_call.1} parent=0 // pred_check
    _
  $region11: #{tpu_custom_call.1} parent=0 // pred_check_branch
    %34 = sbr.rel (0) target = $region13
  $region12: #{tpu_custom_call.1} parent=0 // pred_region
    _
  $region13: #{tpu_custom_call.1} parent=0 // pred_fallthru
    _
  // Predicated region
  $region14: #{tpu_custom_call.1} parent=0 // pred_check
    _
  $region15: #{tpu_custom_call.1} parent=0 // pred_check_branch
    %36 = sbr.rel (0) target = $region17
  $region16: #{tpu_custom_call.1} parent=0 // pred_region
    _
  $region17: #{tpu_custom_call.1} parent=0 // pred_fallthru
    _
  // Predicated region
  $region18: #{tpu_custom_call.1} parent=0 // pred_check
    _
  $region19: #{tpu_custom_call.1} parent=0 // pred_check_branch
    %38 = sbr.rel (0) target = $region21
  $region20: #{tpu_custom_call.1} parent=0 // pred_region
    _
  $region21: #{tpu_custom_call.1} parent=0 // pred_fallthru
    _
  // Predicated region
  $region22: #{tpu_custom_call.1} parent=0 // pred_check
    _
  $region23: #{tpu_custom_call.1} parent=0 // pred_check_branch
    %40 = sbr.rel (0) target = $region25
  $region24: #{tpu_custom_call.1} parent=0 // pred_region
    _
  $region25: #{tpu_custom_call.1} parent=0 // pred_fallthru
    _
  // Predicated region
  $region26: #{tpu_custom_call.1} parent=0 // pred_check
    _
  $region27: #{tpu_custom_call.1} parent=0 // pred_check_branch
    %42 = sbr.rel (0) target = $region29
  $region28: #{tpu_custom_call.1} parent=0 // pred_region
    _
  $region29: #{tpu_custom_call.1} parent=0 // pred_fallthru
    _
  // Predicated region
  $region30: #{tpu_custom_call.1} parent=0 // pred_check
    _
  $region31: #{tpu_custom_call.1} parent=0 // pred_check_branch
    %44 = sbr.rel (0) target = $region33
  $region32: #{tpu_custom_call.1} parent=0 // pred_region
    _
  $region33: #{tpu_custom_call.1} parent=0 // pred_fallthru
    _
  // Predicated region
  $region34: #{tpu_custom_call.1} parent=0 // pred_check
    _
  $region35: #{tpu_custom_call.1} parent=0 // pred_check_branch
    %46 = sbr.rel (0) target = $region37
  $region36: #{tpu_custom_call.1} parent=0 // pred_region
    _
  $region37: #{tpu_custom_call.1} parent=0 // pred_fallthru
    _
  // Predicated region
  $region38: #{tpu_custom_call.1} parent=0 // pred_check
    _
  $region39: #{tpu_custom_call.1} parent=0 // pred_check_branch
    %48 = sbr.rel (0) target = $region41
  $region40: #{tpu_custom_call.1} parent=0 // pred_region
    _
  $region41: #{tpu_custom_call.1} parent=0 // pred_fallthru
    _
  %s50 = smul.u32 0, 8
  loop: start=0, step=1, limit=8
  $region42: #{tpu_custom_call.1} parent=0 // loop_pre_header
    _
  $region43: #{tpu_custom_call.1} parent=0 // loop_header
    %s52 = sphi 0, %s56
    %p53 = scmp.ge.s32.totalorder %s52, 8
  $region44: #{tpu_custom_call.1} parent=0 // loop_header_branch
    %55 = sbr.rel (%p53) target = $region48
  $region45: #{tpu_custom_call.1} parent=0 // loop_body
    %s57 = sadd.s32 %s50, %s52
    %s58 = sld [smem:[#allocation6 + %s57]]
    %s59 = sshrl.u32 %s58, 3
    %s60 = sand.u32 %s58, 7
    %s61 = smul.u32 %s59, 48
    %s62 = sadd.s32 %s60, %s61
    %s63 = scalar_lea.vmem %s2, %s62
    %s64 = sshrl.u32 %s52, 3
    %s65 = sand.u32 %s52, 7
    %s66 = smul.u32 %s64, 48
    %s67 = sadd.s32 %s65, %s66
    %s68 = scalar_lea.vmem [#allocation2], %s67
    %p70 = scmp.lt.u32.totalorder 1, 8
    %p71 = pneg %p70
    // Predicated region
    $region49: #{tpu_custom_call.1} parent=45 // pred_check
      _
    $region50: #{tpu_custom_call.1} parent=45 // pred_check_branch
      %73 = sbr.rel (%p70) target = $region52
    $region51: #{tpu_custom_call.1} parent=45 // pred_region
      %s98 = sand.u32 1, 7
      %p99 = scmp.eq.s32.totalorder %s98, 0
      %p100 = pneg %p99
      // Predicated region
      $region64: #{tpu_custom_call.1} parent=51 // pred_check
        _
      $region65: #{tpu_custom_call.1} parent=51 // pred_check_branch
        %102 = sbr.rel (%p99) target = $region67
      $region66: #{tpu_custom_call.1} parent=51 // pred_region
        %s103 = sand.u32 1, 7
        %s104 = ssub.s32 1, %s103
        %s105 = scalar_lea.vmem %s63, %s104
        %s106 = ssub.s32 1, %s103
        %s107 = scalar_lea.vmem %s68, %s106 [#allocation2]
        %s108 = sshllo.u32 0, %s103
        loop: start=0, step=1, limit=1
        $region68: #{tpu_custom_call.1} parent=66 // loop_pre_header
          _
        $region69: #{tpu_custom_call.1} parent=66 // loop_header
          %s110 = sphi 0, %s114
          %p111 = scmp.ge.s32.totalorder %s110, 1
          %s115 = sphi %s105, %s105
          %s116 = sphi %s107, %s107
        $region70: #{tpu_custom_call.1} parent=66 // loop_header_branch
          %113 = sbr.rel (%p111) target = $region74
        $region71: #{tpu_custom_call.1} parent=66 // loop_body
          %v117 = vld [vmem:[%s115] sm:%s108]
          %118 = vst [vmem:[%s116] sm:%s108] %v117
          %v119 = vld [vmem:[%s115 + $0x8] sm:%s108]
          %120 = vst [vmem:[%s116 + $0x8] sm:%s108] %v119
          %v121 = vld [vmem:[%s115 + $0x10] sm:%s108]
          %122 = vst [vmem:[%s116 + $0x10] sm:%s108] %v121
          %v123 = vld [vmem:[%s115 + $0x18] sm:%s108]
          %124 = vst [vmem:[%s116 + $0x18] sm:%s108] %v123
          %v125 = vld [vmem:[%s115 + $0x20] sm:%s108]
          %126 = vst [vmem:[%s116 + $0x20] sm:%s108] %v125
          %v127 = vld [vmem:[%s115 + $0x28] sm:%s108]
          %128 = vst [vmem:[%s116 + $0x28] sm:%s108] %v127
        $region72: #{tpu_custom_call.1} parent=66 // loop_footer
          %s114 = sadd.s32 1, %s110
        $region73: #{tpu_custom_call.1} parent=66 // loop_footer_branch
          %109 = sbr.rel target = $region69
        $region74: #{tpu_custom_call.1} parent=66 // loop_exit
          _
      $region67: #{tpu_custom_call.1} parent=51 // pred_fallthru
        _
    $region52: #{tpu_custom_call.1} parent=45 // pred_fallthru
      _
    // Predicated region
    $region53: #{tpu_custom_call.1} parent=45 // pred_check
      %p74 = pneg %p70
    $region54: #{tpu_custom_call.1} parent=45 // pred_check_branch
      %76 = sbr.rel (%p74) target = $region56
    $region55: #{tpu_custom_call.1} parent=45 // pred_region
      %s77 = sshllo.u32 0, 1
      loop: start=0, step=1, limit=1
      $region57: #{tpu_custom_call.1} parent=55 // loop_pre_header
        _
      $region58: #{tpu_custom_call.1} parent=55 // loop_header
        %s79 = sphi 0, %s83
        %p80 = scmp.ge.s32.totalorder %s79, 1
        %s84 = sphi %s63, %s63
        %s85 = sphi %s68, %s68
      $region59: #{tpu_custom_call.1} parent=55 // loop_header_branch
        %82 = sbr.rel (%p80) target = $region63
      $region60: #{tpu_custom_call.1} parent=55 // loop_body
        %v86 = vld [vmem:[%s84] sm:%s77]
        %87 = vst [vmem:[%s85] sm:%s77] %v86
        %v88 = vld [vmem:[%s84 + $0x8] sm:%s77]
        %89 = vst [vmem:[%s85 + $0x8] sm:%s77] %v88
        %v90 = vld [vmem:[%s84 + $0x10] sm:%s77]
        %91 = vst [vmem:[%s85 + $0x10] sm:%s77] %v90
        %v92 = vld [vmem:[%s84 + $0x18] sm:%s77]
        %93 = vst [vmem:[%s85 + $0x18] sm:%s77] %v92
        %v94 = vld [vmem:[%s84 + $0x20] sm:%s77]
        %95 = vst [vmem:[%s85 + $0x20] sm:%s77] %v94
        %v96 = vld [vmem:[%s84 + $0x28] sm:%s77]
        %97 = vst [vmem:[%s85 + $0x28] sm:%s77] %v96
      $region61: #{tpu_custom_call.1} parent=55 // loop_footer
        %s83 = sadd.s32 1, %s79
      $region62: #{tpu_custom_call.1} parent=55 // loop_footer_branch
        %78 = sbr.rel target = $region58
      $region63: #{tpu_custom_call.1} parent=55 // loop_exit
        _
    $region56: #{tpu_custom_call.1} parent=45 // pred_fallthru
      _
    // Predicated region
    $region75: #{tpu_custom_call.1} parent=45 // pred_check
      _
    $region76: #{tpu_custom_call.1} parent=45 // pred_check_branch
      %131 = sbr.rel (0) target = $region78
    $region77: #{tpu_custom_call.1} parent=45 // pred_region
      %132 = vsyncadd [#allocation4], 96
    $region78: #{tpu_custom_call.1} parent=45 // pred_fallthru
      _
    %s133 = sadd.s32 %s58, 10
    %s134 = sadd.s32 %s52, 8
    %s135 = sshrl.u32 %s133, 3
    %s136 = sand.u32 %s133, 7
    %s137 = smul.u32 %s135, 48
    %s138 = sadd.s32 %s136, %s137
    %s139 = scalar_lea.vmem %s2, %s138
    %s140 = sshrl.u32 %s134, 3
    %s141 = sand.u32 %s134, 7
    %s142 = smul.u32 %s140, 48
    %s143 = sadd.s32 %s141, %s142
    %s144 = scalar_lea.vmem [#allocation2], %s143
    %p146 = scmp.lt.u32.totalorder 1, 8
    %p147 = pneg %p146
    // Predicated region
    $region79: #{tpu_custom_call.1} parent=45 // pred_check
      _
    $region80: #{tpu_custom_call.1} parent=45 // pred_check_branch
      %149 = sbr.rel (%p146) target = $region82
    $region81: #{tpu_custom_call.1} parent=45 // pred_region
      %s174 = sand.u32 1, 7
      %p175 = scmp.eq.s32.totalorder %s174, 0
      %p176 = pneg %p175
      // Predicated region
      $region94: #{tpu_custom_call.1} parent=81 // pred_check
        _
      $region95: #{tpu_custom_call.1} parent=81 // pred_check_branch
        %178 = sbr.rel (%p175) target = $region97
      $region96: #{tpu_custom_call.1} parent=81 // pred_region
        %s179 = sand.u32 1, 7
        %s180 = ssub.s32 1, %s179
        %s181 = scalar_lea.vmem %s139, %s180
        %s182 = ssub.s32 1, %s179
        %s183 = scalar_lea.vmem %s144, %s182 [#allocation2]
        %s184 = sshllo.u32 0, %s179
        loop: start=0, step=1, limit=1
        $region98: #{tpu_custom_call.1} parent=96 // loop_pre_header
          _
        $region99: #{tpu_custom_call.1} parent=96 // loop_header
          %s186 = sphi 0, %s190
          %p187 = scmp.ge.s32.totalorder %s186, 1
          %s191 = sphi %s181, %s181
          %s192 = sphi %s183, %s183
        $region100: #{tpu_custom_call.1} parent=96 // loop_header_branch
          %189 = sbr.rel (%p187) target = $region104
        $region101: #{tpu_custom_call.1} parent=96 // loop_body
          %v193 = vld [vmem:[%s191] sm:%s184]
          %194 = vst [vmem:[%s192] sm:%s184] %v193
          %v195 = vld [vmem:[%s191 + $0x8] sm:%s184]
          %196 = vst [vmem:[%s192 + $0x8] sm:%s184] %v195
          %v197 = vld [vmem:[%s191 + $0x10] sm:%s184]
          %198 = vst [vmem:[%s192 + $0x10] sm:%s184] %v197
          %v199 = vld [vmem:[%s191 + $0x18] sm:%s184]
          %200 = vst [vmem:[%s192 + $0x18] sm:%s184] %v199
          %v201 = vld [vmem:[%s191 + $0x20] sm:%s184]
          %202 = vst [vmem:[%s192 + $0x20] sm:%s184] %v201
          %v203 = vld [vmem:[%s191 + $0x28] sm:%s184]
          %204 = vst [vmem:[%s192 + $0x28] sm:%s184] %v203
        $region102: #{tpu_custom_call.1} parent=96 // loop_footer
          %s190 = sadd.s32 1, %s186
        $region103: #{tpu_custom_call.1} parent=96 // loop_footer_branch
          %185 = sbr.rel target = $region99
        $region104: #{tpu_custom_call.1} parent=96 // loop_exit
          _
      $region97: #{tpu_custom_call.1} parent=81 // pred_fallthru
        _
    $region82: #{tpu_custom_call.1} parent=45 // pred_fallthru
      _
    // Predicated region
    $region83: #{tpu_custom_call.1} parent=45 // pred_check
      %p150 = pneg %p146
    $region84: #{tpu_custom_call.1} parent=45 // pred_check_branch
      %152 = sbr.rel (%p150) target = $region86
    $region85: #{tpu_custom_call.1} parent=45 // pred_region
      %s153 = sshllo.u32 0, 1
      loop: start=0, step=1, limit=1
      $region87: #{tpu_custom_call.1} parent=85 // loop_pre_header
        _
      $region88: #{tpu_custom_call.1} parent=85 // loop_header
        %s155 = sphi 0, %s159
        %p156 = scmp.ge.s32.totalorder %s155, 1
        %s160 = sphi %s139, %s139
        %s161 = sphi %s144, %s144
      $region89: #{tpu_custom_call.1} parent=85 // loop_header_branch
        %158 = sbr.rel (%p156) target = $region93
      $region90: #{tpu_custom_call.1} parent=85 // loop_body
        %v162 = vld [vmem:[%s160] sm:%s153]
        %163 = vst [vmem:[%s161] sm:%s153] %v162
        %v164 = vld [vmem:[%s160 + $0x8] sm:%s153]
        %165 = vst [vmem:[%s161 + $0x8] sm:%s153] %v164
        %v166 = vld [vmem:[%s160 + $0x10] sm:%s153]
        %167 = vst [vmem:[%s161 + $0x10] sm:%s153] %v166
        %v168 = vld [vmem:[%s160 + $0x18] sm:%s153]
        %169 = vst [vmem:[%s161 + $0x18] sm:%s153] %v168
        %v170 = vld [vmem:[%s160 + $0x20] sm:%s153]
        %171 = vst [vmem:[%s161 + $0x20] sm:%s153] %v170
        %v172 = vld [vmem:[%s160 + $0x28] sm:%s153]
        %173 = vst [vmem:[%s161 + $0x28] sm:%s153] %v172
      $region91: #{tpu_custom_call.1} parent=85 // loop_footer
        %s159 = sadd.s32 1, %s155
      $region92: #{tpu_custom_call.1} parent=85 // loop_footer_branch
        %154 = sbr.rel target = $region88
      $region93: #{tpu_custom_call.1} parent=85 // loop_exit
        _
    $region86: #{tpu_custom_call.1} parent=45 // pred_fallthru
      _
    // Predicated region
    $region105: #{tpu_custom_call.1} parent=45 // pred_check
      _
    $region106: #{tpu_custom_call.1} parent=45 // pred_check_branch
      %207 = sbr.rel (0) target = $region108
    $region107: #{tpu_custom_call.1} parent=45 // pred_region
      %208 = vsyncadd [#allocation4], 96
    $region108: #{tpu_custom_call.1} parent=45 // pred_fallthru
      _
    %s209 = sadd.s32 %s58, 20
    %s210 = sadd.s32 %s52, 16
    %s211 = sshrl.u32 %s209, 3
    %s212 = sand.u32 %s209, 7
    %s213 = smul.u32 %s211, 48
    %s214 = sadd.s32 %s212, %s213
    %s215 = scalar_lea.vmem %s2, %s214
    %s216 = sshrl.u32 %s210, 3
    %s217 = sand.u32 %s210, 7
    %s218 = smul.u32 %s216, 48
    %s219 = sadd.s32 %s217, %s218
    %s220 = scalar_lea.vmem [#allocation2], %s219
    %p222 = scmp.lt.u32.totalorder 1, 8
    %p223 = pneg %p222
    // Predicated region
    $region109: #{tpu_custom_call.1} parent=45 // pred_check
      _
    $region110: #{tpu_custom_call.1} parent=45 // pred_check_branch
      %225 = sbr.rel (%p222) target = $region112
    $region111: #{tpu_custom_call.1} parent=45 // pred_region
      %s250 = sand.u32 1, 7
      %p251 = scmp.eq.s32.totalorder %s250, 0
      %p252 = pneg %p251
      // Predicated region
      $region124: #{tpu_custom_call.1} parent=111 // pred_check
        _
      $region125: #{tpu_custom_call.1} parent=111 // pred_check_branch
        %254 = sbr.rel (%p251) target = $region127
      $region126: #{tpu_custom_call.1} parent=111 // pred_region
        %s255 = sand.u32 1, 7
        %s256 = ssub.s32 1, %s255
        %s257 = scalar_lea.vmem %s215, %s256
        %s258 = ssub.s32 1, %s255
        %s259 = scalar_lea.vmem %s220, %s258 [#allocation2]
        %s260 = sshllo.u32 0, %s255
        loop: start=0, step=1, limit=1
        $region128: #{tpu_custom_call.1} parent=126 // loop_pre_header
          _
        $region129: #{tpu_custom_call.1} parent=126 // loop_header
          %s262 = sphi 0, %s266
          %p263 = scmp.ge.s32.totalorder %s262, 1
          %s267 = sphi %s257, %s257
          %s268 = sphi %s259, %s259
        $region130: #{tpu_custom_call.1} parent=126 // loop_header_branch
          %265 = sbr.rel (%p263) target = $region134
        $region131: #{tpu_custom_call.1} parent=126 // loop_body
          %v269 = vld [vmem:[%s267] sm:%s260]
          %270 = vst [vmem:[%s268] sm:%s260] %v269
          %v271 = vld [vmem:[%s267 + $0x8] sm:%s260]
          %272 = vst [vmem:[%s268 + $0x8] sm:%s260] %v271
          %v273 = vld [vmem:[%s267 + $0x10] sm:%s260]
          %274 = vst [vmem:[%s268 + $0x10] sm:%s260] %v273
          %v275 = vld [vmem:[%s267 + $0x18] sm:%s260]
          %276 = vst [vmem:[%s268 + $0x18] sm:%s260] %v275
          %v277 = vld [vmem:[%s267 + $0x20] sm:%s260]
          %278 = vst [vmem:[%s268 + $0x20] sm:%s260] %v277
          %v279 = vld [vmem:[%s267 + $0x28] sm:%s260]
          %280 = vst [vmem:[%s268 + $0x28] sm:%s260] %v279
        $region132: #{tpu_custom_call.1} parent=126 // loop_footer
          %s266 = sadd.s32 1, %s262
        $region133: #{tpu_custom_call.1} parent=126 // loop_footer_branch
          %261 = sbr.rel target = $region129
        $region134: #{tpu_custom_call.1} parent=126 // loop_exit
          _
      $region127: #{tpu_custom_call.1} parent=111 // pred_fallthru
        _
    $region112: #{tpu_custom_call.1} parent=45 // pred_fallthru
      _
    // Predicated region
    $region113: #{tpu_custom_call.1} parent=45 // pred_check
      %p226 = pneg %p222
    $region114: #{tpu_custom_call.1} parent=45 // pred_check_branch
      %228 = sbr.rel (%p226) target = $region116
    $region115: #{tpu_custom_call.1} parent=45 // pred_region
      %s229 = sshllo.u32 0, 1
      loop: start=0, step=1, limit=1
      $region117: #{tpu_custom_call.1} parent=115 // loop_pre_header
        _
      $region118: #{tpu_custom_call.1} parent=115 // loop_header
        %s231 = sphi 0, %s235
        %p232 = scmp.ge.s32.totalorder %s231, 1
        %s236 = sphi %s215, %s215
        %s237 = sphi %s220, %s220
      $region119: #{tpu_custom_call.1} parent=115 // loop_header_branch
        %234 = sbr.rel (%p232) target = $region123
      $region120: #{tpu_custom_call.1} parent=115 // loop_body
        %v238 = vld [vmem:[%s236] sm:%s229]
        %239 = vst [vmem:[%s237] sm:%s229] %v238
        %v240 = vld [vmem:[%s236 + $0x8] sm:%s229]
        %241 = vst [vmem:[%s237 + $0x8] sm:%s229] %v240
        %v242 = vld [vmem:[%s236 + $0x10] sm:%s229]
        %243 = vst [vmem:[%s237 + $0x10] sm:%s229] %v242
        %v244 = vld [vmem:[%s236 + $0x18] sm:%s229]
        %245 = vst [vmem:[%s237 + $0x18] sm:%s229] %v244
        %v246 = vld [vmem:[%s236 + $0x20] sm:%s229]
        %247 = vst [vmem:[%s237 + $0x20] sm:%s229] %v246
        %v248 = vld [vmem:[%s236 + $0x28] sm:%s229]
        %249 = vst [vmem:[%s237 + $0x28] sm:%s229] %v248
      $region121: #{tpu_custom_call.1} parent=115 // loop_footer
        %s235 = sadd.s32 1, %s231
      $region122: #{tpu_custom_call.1} parent=115 // loop_footer_branch
        %230 = sbr.rel target = $region118
      $region123: #{tpu_custom_call.1} parent=115 // loop_exit
        _
    $region116: #{tpu_custom_call.1} parent=45 // pred_fallthru
      _
    // Predicated region
    $region135: #{tpu_custom_call.1} parent=45 // pred_check
      _
    $region136: #{tpu_custom_call.1} parent=45 // pred_check_branch
      %283 = sbr.rel (0) target = $region138
    $region137: #{tpu_custom_call.1} parent=45 // pred_region
      %284 = vsyncadd [#allocation4], 96
    $region138: #{tpu_custom_call.1} parent=45 // pred_fallthru
      _
    %s285 = sld [smem:[#allocation7 + %s57]]
    %s286 = sshrl.u32 %s285, 3
    %s287 = sand.u32 %s285, 7
    %s288 = smul.u32 %s286, 48
    %s289 = sadd.s32 %s287, %s288
    %s290 = scalar_lea.vmem %s3, %s289
    %s291 = scalar_lea.vmem [#allocation3], %s67
    %s292 = scalar_lea.sflag [#allocation4], 1
    %p294 = scmp.lt.u32.totalorder 1, 8
    %p295 = pneg %p294
    // Predicated region
    $region139: #{tpu_custom_call.1} parent=45 // pred_check
      _
    $region140: #{tpu_custom_call.1} parent=45 // pred_check_branch
      %297 = sbr.rel (%p294) target = $region142
    $region141: #{tpu_custom_call.1} parent=45 // pred_region
      %s322 = sand.u32 1, 7
      %p323 = scmp.eq.s32.totalorder %s322, 0
      %p324 = pneg %p323
      // Predicated region
      $region154: #{tpu_custom_call.1} parent=141 // pred_check
        _
      $region155: #{tpu_custom_call.1} parent=141 // pred_check_branch
        %326 = sbr.rel (%p323) target = $region157
      $region156: #{tpu_custom_call.1} parent=141 // pred_region
        %s327 = sand.u32 1, 7
        %s328 = ssub.s32 1, %s327
        %s329 = scalar_lea.vmem %s290, %s328
        %s330 = ssub.s32 1, %s327
        %s331 = scalar_lea.vmem %s291, %s330 [#allocation3]
        %s332 = sshllo.u32 0, %s327
        loop: start=0, step=1, limit=1
        $region158: #{tpu_custom_call.1} parent=156 // loop_pre_header
          _
        $region159: #{tpu_custom_call.1} parent=156 // loop_header
          %s334 = sphi 0, %s338
          %p335 = scmp.ge.s32.totalorder %s334, 1
          %s339 = sphi %s329, %s329
          %s340 = sphi %s331, %s331
        $region160: #{tpu_custom_call.1} parent=156 // loop_header_branch
          %337 = sbr.rel (%p335) target = $region164
        $region161: #{tpu_custom_call.1} parent=156 // loop_body
          %v341 = vld [vmem:[%s339] sm:%s332]
          %342 = vst [vmem:[%s340] sm:%s332] %v341
          %v343 = vld [vmem:[%s339 + $0x8] sm:%s332]
          %344 = vst [vmem:[%s340 + $0x8] sm:%s332] %v343
          %v345 = vld [vmem:[%s339 + $0x10] sm:%s332]
          %346 = vst [vmem:[%s340 + $0x10] sm:%s332] %v345
          %v347 = vld [vmem:[%s339 + $0x18] sm:%s332]
          %348 = vst [vmem:[%s340 + $0x18] sm:%s332] %v347
          %v349 = vld [vmem:[%s339 + $0x20] sm:%s332]
          %350 = vst [vmem:[%s340 + $0x20] sm:%s332] %v349
          %v351 = vld [vmem:[%s339 + $0x28] sm:%s332]
          %352 = vst [vmem:[%s340 + $0x28] sm:%s332] %v351
        $region162: #{tpu_custom_call.1} parent=156 // loop_footer
          %s338 = sadd.s32 1, %s334
        $region163: #{tpu_custom_call.1} parent=156 // loop_footer_branch
          %333 = sbr.rel target = $region159
        $region164: #{tpu_custom_call.1} parent=156 // loop_exit
          _
      $region157: #{tpu_custom_call.1} parent=141 // pred_fallthru
        _
    $region142: #{tpu_custom_call.1} parent=45 // pred_fallthru
      _
    // Predicated region
    $region143: #{tpu_custom_call.1} parent=45 // pred_check
      %p298 = pneg %p294
    $region144: #{tpu_custom_call.1} parent=45 // pred_check_branch
      %300 = sbr.rel (%p298) target = $region146
    $region145: #{tpu_custom_call.1} parent=45 // pred_region
      %s301 = sshllo.u32 0, 1
      loop: start=0, step=1, limit=1
      $region147: #{tpu_custom_call.1} parent=145 // loop_pre_header
        _
      $region148: #{tpu_custom_call.1} parent=145 // loop_header
        %s303 = sphi 0, %s307
        %p304 = scmp.ge.s32.totalorder %s303, 1
        %s308 = sphi %s290, %s290
        %s309 = sphi %s291, %s291
      $region149: #{tpu_custom_call.1} parent=145 // loop_header_branch
        %306 = sbr.rel (%p304) target = $region153
      $region150: #{tpu_custom_call.1} parent=145 // loop_body
        %v310 = vld [vmem:[%s308] sm:%s301]
        %311 = vst [vmem:[%s309] sm:%s301] %v310
        %v312 = vld [vmem:[%s308 + $0x8] sm:%s301]
        %313 = vst [vmem:[%s309 + $0x8] sm:%s301] %v312
        %v314 = vld [vmem:[%s308 + $0x10] sm:%s301]
        %315 = vst [vmem:[%s309 + $0x10] sm:%s301] %v314
        %v316 = vld [vmem:[%s308 + $0x18] sm:%s301]
        %317 = vst [vmem:[%s309 + $0x18] sm:%s301] %v316
        %v318 = vld [vmem:[%s308 + $0x20] sm:%s301]
        %319 = vst [vmem:[%s309 + $0x20] sm:%s301] %v318
        %v320 = vld [vmem:[%s308 + $0x28] sm:%s301]
        %321 = vst [vmem:[%s309 + $0x28] sm:%s301] %v320
      $region151: #{tpu_custom_call.1} parent=145 // loop_footer
        %s307 = sadd.s32 1, %s303
      $region152: #{tpu_custom_call.1} parent=145 // loop_footer_branch
        %302 = sbr.rel target = $region148
      $region153: #{tpu_custom_call.1} parent=145 // loop_exit
        _
    $region146: #{tpu_custom_call.1} parent=45 // pred_fallthru
      _
    // Predicated region
    $region165: #{tpu_custom_call.1} parent=45 // pred_check
      _
    $region166: #{tpu_custom_call.1} parent=45 // pred_check_branch
      %355 = sbr.rel (0) target = $region168
    $region167: #{tpu_custom_call.1} parent=45 // pred_region
      %356 = vsyncadd %s292, 96
    $region168: #{tpu_custom_call.1} parent=45 // pred_fallthru
      _
    %s357 = sadd.s32 %s285, 12
    %s358 = sshrl.u32 %s357, 3
    %s359 = sand.u32 %s357, 7
    %s360 = smul.u32 %s358, 48
    %s361 = sadd.s32 %s359, %s360
    %s362 = scalar_lea.vmem %s3, %s361
    %s363 = scalar_lea.vmem [#allocation3], %s143
    %p365 = scmp.lt.u32.totalorder 1, 8
    %p366 = pneg %p365
    // Predicated region
    $region169: #{tpu_custom_call.1} parent=45 // pred_check
      _
    $region170: #{tpu_custom_call.1} parent=45 // pred_check_branch
      %368 = sbr.rel (%p365) target = $region172
    $region171: #{tpu_custom_call.1} parent=45 // pred_region
      %s393 = sand.u32 1, 7
      %p394 = scmp.eq.s32.totalorder %s393, 0
      %p395 = pneg %p394
      // Predicated region
      $region184: #{tpu_custom_call.1} parent=171 // pred_check
        _
      $region185: #{tpu_custom_call.1} parent=171 // pred_check_branch
        %397 = sbr.rel (%p394) target = $region187
      $region186: #{tpu_custom_call.1} parent=171 // pred_region
        %s398 = sand.u32 1, 7
        %s399 = ssub.s32 1, %s398
        %s400 = scalar_lea.vmem %s362, %s399
        %s401 = ssub.s32 1, %s398
        %s402 = scalar_lea.vmem %s363, %s401 [#allocation3]
        %s403 = sshllo.u32 0, %s398
        loop: start=0, step=1, limit=1
        $region188: #{tpu_custom_call.1} parent=186 // loop_pre_header
          _
        $region189: #{tpu_custom_call.1} parent=186 // loop_header
          %s405 = sphi 0, %s409
          %p406 = scmp.ge.s32.totalorder %s405, 1
          %s410 = sphi %s400, %s400
          %s411 = sphi %s402, %s402
        $region190: #{tpu_custom_call.1} parent=186 // loop_header_branch
          %408 = sbr.rel (%p406) target = $region194
        $region191: #{tpu_custom_call.1} parent=186 // loop_body
          %v412 = vld [vmem:[%s410] sm:%s403]
          %413 = vst [vmem:[%s411] sm:%s403] %v412
          %v414 = vld [vmem:[%s410 + $0x8] sm:%s403]
          %415 = vst [vmem:[%s411 + $0x8] sm:%s403] %v414
          %v416 = vld [vmem:[%s410 + $0x10] sm:%s403]
          %417 = vst [vmem:[%s411 + $0x10] sm:%s403] %v416
          %v418 = vld [vmem:[%s410 + $0x18] sm:%s403]
          %419 = vst [vmem:[%s411 + $0x18] sm:%s403] %v418
          %v420 = vld [vmem:[%s410 + $0x20] sm:%s403]
          %421 = vst [vmem:[%s411 + $0x20] sm:%s403] %v420
          %v422 = vld [vmem:[%s410 + $0x28] sm:%s403]
          %423 = vst [vmem:[%s411 + $0x28] sm:%s403] %v422
        $region192: #{tpu_custom_call.1} parent=186 // loop_footer
          %s409 = sadd.s32 1, %s405
        $region193: #{tpu_custom_call.1} parent=186 // loop_footer_branch
          %404 = sbr.rel target = $region189
        $region194: #{tpu_custom_call.1} parent=186 // loop_exit
          _
      $region187: #{tpu_custom_call.1} parent=171 // pred_fallthru
        _
    $region172: #{tpu_custom_call.1} parent=45 // pred_fallthru
      _
    // Predicated region
    $region173: #{tpu_custom_call.1} parent=45 // pred_check
      %p369 = pneg %p365
    $region174: #{tpu_custom_call.1} parent=45 // pred_check_branch
      %371 = sbr.rel (%p369) target = $region176
    $region175: #{tpu_custom_call.1} parent=45 // pred_region
      %s372 = sshllo.u32 0, 1
      loop: start=0, step=1, limit=1
      $region177: #{tpu_custom_call.1} parent=175 // loop_pre_header
        _
      $region178: #{tpu_custom_call.1} parent=175 // loop_header
        %s374 = sphi 0, %s378
        %p375 = scmp.ge.s32.totalorder %s374, 1
        %s379 = sphi %s362, %s362
        %s380 = sphi %s363, %s363
      $region179: #{tpu_custom_call.1} parent=175 // loop_header_branch
        %377 = sbr.rel (%p375) target = $region183
      $region180: #{tpu_custom_call.1} parent=175 // loop_body
        %v381 = vld [vmem:[%s379] sm:%s372]
        %382 = vst [vmem:[%s380] sm:%s372] %v381
        %v383 = vld [vmem:[%s379 + $0x8] sm:%s372]
        %384 = vst [vmem:[%s380 + $0x8] sm:%s372] %v383
        %v385 = vld [vmem:[%s379 + $0x10] sm:%s372]
        %386 = vst [vmem:[%s380 + $0x10] sm:%s372] %v385
        %v387 = vld [vmem:[%s379 + $0x18] sm:%s372]
        %388 = vst [vmem:[%s380 + $0x18] sm:%s372] %v387
        %v389 = vld [vmem:[%s379 + $0x20] sm:%s372]
        %390 = vst [vmem:[%s380 + $0x20] sm:%s372] %v389
        %v391 = vld [vmem:[%s379 + $0x28] sm:%s372]
        %392 = vst [vmem:[%s380 + $0x28] sm:%s372] %v391
      $region181: #{tpu_custom_call.1} parent=175 // loop_footer
        %s378 = sadd.s32 1, %s374
      $region182: #{tpu_custom_call.1} parent=175 // loop_footer_branch
        %373 = sbr.rel target = $region178
      $region183: #{tpu_custom_call.1} parent=175 // loop_exit
        _
    $region176: #{tpu_custom_call.1} parent=45 // pred_fallthru
      _
    // Predicated region
    $region195: #{tpu_custom_call.1} parent=45 // pred_check
      _
    $region196: #{tpu_custom_call.1} parent=45 // pred_check_branch
      %426 = sbr.rel (0) target = $region198
    $region197: #{tpu_custom_call.1} parent=45 // pred_region
      %427 = vsyncadd %s292, 96
    $region198: #{tpu_custom_call.1} parent=45 // pred_fallthru
      _
  $region46: #{tpu_custom_call.1} parent=0 // loop_footer
    %s56 = sadd.s32 1, %s52
  $region47: #{tpu_custom_call.1} parent=0 // loop_footer_branch
    %51 = sbr.rel target = $region43
  $region48: #{tpu_custom_call.1} parent=0 // loop_exit
    _
  loop: start=0, step=1, limit=8
  $region199: #{tpu_custom_call.1} parent=0 // loop_pre_header
    _
  $region200: #{tpu_custom_call.1} parent=0 // loop_header
    %s429 = sphi 0, %s433
    %p430 = scmp.ge.s32.totalorder %s429, 8
  $region201: #{tpu_custom_call.1} parent=0 // loop_header_branch
    %432 = sbr.rel (%p430) target = $region205
  $region202: #{tpu_custom_call.1} parent=0 // loop_body
    %s434 = sadd.s32 %s50, %s429
    %s435 = sld [smem:[#allocation6 + %s434]]
    %s436 = smul.u32 1, 6
    %s437 = sshll.u32 %s436, 4
    %438 = dma.done [#allocation4], %s437
    %s439 = sshll.u32 %s436, 4
    %440 = dma.done [#allocation4], %s439
    %s441 = sshll.u32 %s436, 4
    %442 = dma.done [#allocation4], %s441
  $region203: #{tpu_custom_call.1} parent=0 // loop_footer
    %s433 = sadd.s32 1, %s429
  $region204: #{tpu_custom_call.1} parent=0 // loop_footer_branch
    %428 = sbr.rel target = $region200
  $region205: #{tpu_custom_call.1} parent=0 // loop_exit
    _
  %v443 = vld [vmem:[#allocation2] sm:$0xff]
  %v444 = vld [vmem:[#allocation2 + $0x8] sm:$0xff]
  %v445 = vld [vmem:[#allocation2 + $0x10] sm:$0xff]
  %v446 = vld [vmem:[#allocation2 + $0x18] sm:$0xff]
  %v447 = vld [vmem:[#allocation2 + $0x20] sm:$0xff]
  %v448 = vld [vmem:[#allocation2 + $0x28] sm:$0xff]
  %v449 = vld [vmem:[#allocation2 + $0x30] sm:$0xff]
  %v450 = vld [vmem:[#allocation2 + $0x38] sm:$0xff]
  %v451 = vld [vmem:[#allocation2 + $0x40] sm:$0xff]
  %v452 = vld [vmem:[#allocation2 + $0x48] sm:$0xff]
  %v453 = vld [vmem:[#allocation2 + $0x50] sm:$0xff]
  %v454 = vld [vmem:[#allocation2 + $0x58] sm:$0xff]
  %v455 = vld [vmem:[#allocation2 + $0x60] sm:$0xff]
  %v456 = vld [vmem:[#allocation2 + $0x68] sm:$0xff]
  %v457 = vld [vmem:[#allocation2 + $0x70] sm:$0xff]
  %v458 = vld [vmem:[#allocation2 + $0x78] sm:$0xff]
  %v459 = vld [vmem:[#allocation2 + $0x80] sm:$0xff]
  %v460 = vld [vmem:[#allocation2 + $0x88] sm:$0xff]
  %v461 = vpack.c.bf16 %v449, %v443
  %v462 = vpack.c.bf16 %v450, %v444
  %v463 = vpack.c.bf16 %v451, %v445
  %v464 = vpack.c.bf16 %v452, %v446
  %v465 = vpack.c.bf16 %v453, %v447
  %v466 = vpack.c.bf16 %v454, %v448
  %v467 = vpack.c.bf16 %v455, %v455
  %v468 = vpack.c.bf16 %v456, %v456
  %v469 = vpack.c.bf16 %v457, %v457
  %v470 = vpack.c.bf16 %v458, %v458
  %v471 = vpack.c.bf16 %v459, %v459
  %v472 = vpack.c.bf16 %v460, %v460
  %v473 = vld [vmem:[%s4] sm:$0xf]
  %v474 = vld [vmem:[%s4 + $0x4] sm:$0xf]
  %v475 = vld [vmem:[%s4 + $0x8] sm:$0xf]
  %v476 = vld [vmem:[%s4 + $0xc] sm:$0xf]
  %v477 = vld [vmem:[%s4 + $0x10] sm:$0xf]
  %v478 = vld [vmem:[%s4 + $0x14] sm:$0xf]
  %v479 = vld [vmem:[%s4 + $0x18] sm:$0xf]
  %v480 = vld [vmem:[%s4 + $0x1c] sm:$0xf]
  %v481 = vld [vmem:[%s4 + $0x20] sm:$0xf]
  %v482 = vld [vmem:[%s4 + $0x24] sm:$0xf]
  %v483 = vld [vmem:[%s4 + $0x28] sm:$0xf]
  %v484 = vld [vmem:[%s4 + $0x2c] sm:$0xf]
  %v485 = vld [vmem:[%s4 + $0x30] sm:$0xf]
  %v486 = vld [vmem:[%s4 + $0x34] sm:$0xf]
  %v487 = vld [vmem:[%s4 + $0x38] sm:$0xf]
  %v488 = vld [vmem:[%s4 + $0x3c] sm:$0xf]
  %v489 = vld [vmem:[%s4 + $0x40] sm:$0xf]
  %v490 = vld [vmem:[%s4 + $0x44] sm:$0xf]
  %v491 = vld [vmem:[%s4 + $0x48] sm:$0xf]
  %v492 = vld [vmem:[%s4 + $0x4c] sm:$0xf]
  %v493 = vld [vmem:[%s4 + $0x50] sm:$0xf]
  %v494 = vld [vmem:[%s4 + $0x54] sm:$0xf]
  %v495 = vld [vmem:[%s4 + $0x58] sm:$0xf]
  %v496 = vld [vmem:[%s4 + $0x5c] sm:$0xf]
  %v497 = vld [vmem:[%s4 + $0x60] sm:$0xf]
  %v498 = vld [vmem:[%s4 + $0x64] sm:$0xf]
  %v499 = vld [vmem:[%s4 + $0x68] sm:$0xf]
  %v500 = vld [vmem:[%s4 + $0x6c] sm:$0xf]
  %v501 = vld [vmem:[%s4 + $0x70] sm:$0xf]
  %v502 = vld [vmem:[%s4 + $0x74] sm:$0xf]
  %v503 = vld [vmem:[%s4 + $0x78] sm:$0xf]
  %v504 = vld [vmem:[%s4 + $0x7c] sm:$0xf]
  %v505 = vld [vmem:[%s4 + $0x80] sm:$0xf]
  %v506 = vld [vmem:[%s4 + $0x84] sm:$0xf]
  %v507 = vld [vmem:[%s4 + $0x88] sm:$0xf]
  %v508 = vld [vmem:[%s4 + $0x8c] sm:$0xf]
  %v509 = vld [vmem:[%s4 + $0x90] sm:$0xf]
  %v510 = vld [vmem:[%s4 + $0x94] sm:$0xf]
  %v511 = vld [vmem:[%s4 + $0x98] sm:$0xf]
  %v512 = vld [vmem:[%s4 + $0x9c] sm:$0xf]
  %v513 = vld [vmem:[%s4 + $0xa0] sm:$0xf]
  %v514 = vld [vmem:[%s4 + $0xa4] sm:$0xf]
  %v515 = vld [vmem:[%s4 + $0xa8] sm:$0xf]
  %v516 = vld [vmem:[%s4 + $0xac] sm:$0xf]
  %v517 = vld [vmem:[%s4 + $0xb0] sm:$0xf]
  %v518 = vld [vmem:[%s4 + $0xb4] sm:$0xf]
  %v519 = vld [vmem:[%s4 + $0xb8] sm:$0xf]
  %v520 = vld [vmem:[%s4 + $0xbc] sm:$0xf]
  %v521 = vld [vmem:[%s4 + $0xc0] sm:$0xf]
  %v522 = vld [vmem:[%s4 + $0xc4] sm:$0xf]
  %v523 = vld [vmem:[%s4 + $0xc8] sm:$0xf]
  %v524 = vld [vmem:[%s4 + $0xcc] sm:$0xf]
  %v525 = vld [vmem:[%s4 + $0xd0] sm:$0xf]
  %v526 = vld [vmem:[%s4 + $0xd4] sm:$0xf]
  %v527 = vld [vmem:[%s4 + $0xd8] sm:$0xf]
  %v528 = vld [vmem:[%s4 + $0xdc] sm:$0xf]
  %v529 = vld [vmem:[%s4 + $0xe0] sm:$0xf]
  %v530 = vld [vmem:[%s4 + $0xe4] sm:$0xf]
  %v531 = vld [vmem:[%s4 + $0xe8] sm:$0xf]
  %v532 = vld [vmem:[%s4 + $0xec] sm:$0xf]
  %v533 = vld [vmem:[%s4 + $0xf0] sm:$0xf]
  %v534 = vld [vmem:[%s4 + $0xf4] sm:$0xf]
  %v535 = vld [vmem:[%s4 + $0xf8] sm:$0xf]
  %v536 = vld [vmem:[%s4 + $0xfc] sm:$0xf]
  %v537 = vld [vmem:[%s4 + $0x100] sm:$0xf]
  %v538 = vld [vmem:[%s4 + $0x104] sm:$0xf]
  %v539 = vld [vmem:[%s4 + $0x108] sm:$0xf]
  %v540 = vld [vmem:[%s4 + $0x10c] sm:$0xf]
  %v541 = vld [vmem:[%s4 + $0x110] sm:$0xf]
  %v542 = vld [vmem:[%s4 + $0x114] sm:$0xf]
  %v543 = vld [vmem:[%s4 + $0x118] sm:$0xf]
  %v544 = vld [vmem:[%s4 + $0x11c] sm:$0xf]
  %v545 = vld [vmem:[%s4 + $0x120] sm:$0xf]
  %v546 = vld [vmem:[%s4 + $0x124] sm:$0xf]
  %v547 = vld [vmem:[%s4 + $0x128] sm:$0xf]
  %v548 = vld [vmem:[%s4 + $0x12c] sm:$0xf]
  %v549 = vld [vmem:[%s4 + $0x130] sm:$0xf]
  %v550 = vld [vmem:[%s4 + $0x134] sm:$0xf]
  %v551 = vld [vmem:[%s4 + $0x138] sm:$0xf]
  %v552 = vld [vmem:[%s4 + $0x13c] sm:$0xf]
  %v553 = vld [vmem:[%s4 + $0x140] sm:$0xf]
  %v554 = vld [vmem:[%s4 + $0x144] sm:$0xf]
  %v555 = vld [vmem:[%s4 + $0x148] sm:$0xf]
  %v556 = vld [vmem:[%s4 + $0x14c] sm:$0xf]
  %v557 = vld [vmem:[%s4 + $0x150] sm:$0xf]
  %v558 = vld [vmem:[%s4 + $0x154] sm:$0xf]
  %v559 = vld [vmem:[%s4 + $0x158] sm:$0xf]
  %v560 = vld [vmem:[%s4 + $0x15c] sm:$0xf]
  %v561 = vld [vmem:[%s4 + $0x160] sm:$0xf]
  %v562 = vld [vmem:[%s4 + $0x164] sm:$0xf]
  %v563 = vld [vmem:[%s4 + $0x168] sm:$0xf]
  %v564 = vld [vmem:[%s4 + $0x16c] sm:$0xf]
  %v565 = vld [vmem:[%s4 + $0x170] sm:$0xf]
  %v566 = vld [vmem:[%s4 + $0x174] sm:$0xf]
  %v567 = vld [vmem:[%s4 + $0x178] sm:$0xf]
  %v568 = vld [vmem:[%s4 + $0x17c] sm:$0xf]
  %v569 = vld [vmem:[%s5] sm:$0x1]
  %v571 = vlaneseq
  %v572 = vshrl.u32 %v571, 7
  %v573 = vsub.s32 0, %v572
  %v574 = vrot.slane %v569, %v573
  %v672 = vunpack.c.l.b16 %v473
  %v673 = vunpack.c.l.b16 %v474
  %v674 = vunpack.c.l.b16 %v475
  %v675 = vunpack.c.l.b16 %v476
  %v676 = vunpack.c.l.b16 %v477
  %v677 = vunpack.c.l.b16 %v478
  %v678 = vunpack.c.l.b16 %v479
  %v679 = vunpack.c.l.b16 %v480
  %v680 = vunpack.c.l.b16 %v481
  %v681 = vunpack.c.l.b16 %v482
  %v682 = vunpack.c.l.b16 %v483
  %v683 = vunpack.c.l.b16 %v484
  %v684 = vunpack.c.l.b16 %v485
  %v685 = vunpack.c.l.b16 %v486
  %v686 = vunpack.c.l.b16 %v487
  %v687 = vunpack.c.l.b16 %v488
  %v688 = vunpack.c.l.b16 %v489
  %v689 = vunpack.c.l.b16 %v490
  %v690 = vunpack.c.l.b16 %v491
  %v691 = vunpack.c.l.b16 %v492
  %v692 = vunpack.c.l.b16 %v493
  %v693 = vunpack.c.l.b16 %v494
  %v694 = vunpack.c.l.b16 %v495
  %v695 = vunpack.c.l.b16 %v496
  %v696 = vunpack.c.l.b16 %v497
  %v697 = vunpack.c.l.b16 %v498
  %v698 = vunpack.c.l.b16 %v499
  %v699 = vunpack.c.l.b16 %v500
  %v700 = vunpack.c.l.b16 %v501
  %v701 = vunpack.c.l.b16 %v502
  %v702 = vunpack.c.l.b16 %v503
  %v703 = vunpack.c.l.b16 %v504
  %v704 = vunpack.c.l.b16 %v505
  %v705 = vunpack.c.l.b16 %v506
  %v706 = vunpack.c.l.b16 %v507
  %v707 = vunpack.c.l.b16 %v508
  %v708 = vunpack.c.l.b16 %v509
  %v709 = vunpack.c.l.b16 %v510
  %v710 = vunpack.c.l.b16 %v511
  %v711 = vunpack.c.l.b16 %v512
  %v712 = vunpack.c.l.b16 %v513
  %v713 = vunpack.c.l.b16 %v514
  %v714 = vunpack.c.l.b16 %v515
  %v715 = vunpack.c.l.b16 %v516
  %v716 = vunpack.c.l.b16 %v517
  %v717 = vunpack.c.l.b16 %v518
  %v718 = vunpack.c.l.b16 %v519
  %v719 = vunpack.c.l.b16 %v520
  %v720 = vunpack.c.l.b16 %v521
  %v721 = vunpack.c.l.b16 %v522
  %v722 = vunpack.c.l.b16 %v523
  %v723 = vunpack.c.l.b16 %v524
  %v724 = vunpack.c.l.b16 %v525
  %v725 = vunpack.c.l.b16 %v526
  %v726 = vunpack.c.l.b16 %v527
  %v727 = vunpack.c.l.b16 %v528
  %v728 = vunpack.c.l.b16 %v529
  %v729 = vunpack.c.l.b16 %v530
  %v730 = vunpack.c.l.b16 %v531
  %v731 = vunpack.c.l.b16 %v532
  %v732 = vunpack.c.l.b16 %v533
  %v733 = vunpack.c.l.b16 %v534
  %v734 = vunpack.c.l.b16 %v535
  %v735 = vunpack.c.l.b16 %v536
  %v736 = vunpack.c.l.b16 %v537
  %v737 = vunpack.c.l.b16 %v538
  %v738 = vunpack.c.l.b16 %v539
  %v739 = vunpack.c.l.b16 %v540
  %v740 = vunpack.c.l.b16 %v541
  %v741 = vunpack.c.l.b16 %v542
  %v742 = vunpack.c.l.b16 %v543
  %v743 = vunpack.c.l.b16 %v544
  %v744 = vunpack.c.l.b16 %v545
  %v745 = vunpack.c.l.b16 %v546
  %v746 = vunpack.c.l.b16 %v547
  %v747 = vunpack.c.l.b16 %v548
  %v748 = vunpack.c.l.b16 %v549
  %v749 = vunpack.c.l.b16 %v550
  %v750 = vunpack.c.l.b16 %v551
  %v751 = vunpack.c.l.b16 %v552
  %v752 = vunpack.c.l.b16 %v553
  %v753 = vunpack.c.l.b16 %v554
  %v754 = vunpack.c.l.b16 %v555
  %v755 = vunpack.c.l.b16 %v556
  %v756 = vunpack.c.l.b16 %v557
  %v757 = vunpack.c.l.b16 %v558
  %v758 = vunpack.c.l.b16 %v559
  %v759 = vunpack.c.l.b16 %v560
  %v760 = vunpack.c.l.b16 %v561
  %v761 = vunpack.c.l.b16 %v562
  %v762 = vunpack.c.l.b16 %v563
  %v763 = vunpack.c.l.b16 %v564
  %v764 = vunpack.c.l.b16 %v565
  %v765 = vunpack.c.l.b16 %v566
  %v766 = vunpack.c.l.b16 %v567
  %v767 = vunpack.c.l.b16 %v568
  %v768 = vpack.c.b16 %v673, %v672
  %v769 = vpack.c.b16 %v675, %v674
  %v770 = vpack.c.b16 %v677, %v676
  %v771 = vpack.c.b16 %v679, %v678
  %v772 = vpack.c.b16 %v681, %v680
  %v773 = vpack.c.b16 %v683, %v682
  %v774 = vpack.c.b16 %v685, %v684
  %v775 = vpack.c.b16 %v687, %v686
  %v776 = vpack.c.b16 %v689, %v688
  %v777 = vpack.c.b16 %v691, %v690
  %v778 = vpack.c.b16 %v693, %v692
  %v779 = vpack.c.b16 %v695, %v694
  %v780 = vpack.c.b16 %v697, %v696
  %v781 = vpack.c.b16 %v699, %v698
  %v782 = vpack.c.b16 %v701, %v700
  %v783 = vpack.c.b16 %v703, %v702
  %v784 = vpack.c.b16 %v705, %v704
  %v785 = vpack.c.b16 %v707, %v706
  %v786 = vpack.c.b16 %v709, %v708
  %v787 = vpack.c.b16 %v711, %v710
  %v788 = vpack.c.b16 %v713, %v712
  %v789 = vpack.c.b16 %v715, %v714
  %v790 = vpack.c.b16 %v717, %v716
  %v791 = vpack.c.b16 %v719, %v718
  %v792 = vpack.c.b16 %v721, %v720
  %v793 = vpack.c.b16 %v723, %v722
  %v794 = vpack.c.b16 %v725, %v724
  %v795 = vpack.c.b16 %v727, %v726
  %v796 = vpack.c.b16 %v729, %v728
  %v797 = vpack.c.b16 %v731, %v730
  %v798 = vpack.c.b16 %v733, %v732
  %v799 = vpack.c.b16 %v735, %v734
  %v800 = vpack.c.b16 %v737, %v736
  %v801 = vpack.c.b16 %v739, %v738
  %v802 = vpack.c.b16 %v741, %v740
  %v803 = vpack.c.b16 %v743, %v742
  %v804 = vpack.c.b16 %v745, %v744
  %v805 = vpack.c.b16 %v747, %v746
  %v806 = vpack.c.b16 %v749, %v748
  %v807 = vpack.c.b16 %v751, %v750
  %v808 = vpack.c.b16 %v753, %v752
  %v809 = vpack.c.b16 %v755, %v754
  %v810 = vpack.c.b16 %v757, %v756
  %v811 = vpack.c.b16 %v759, %v758
  %v812 = vpack.c.b16 %v761, %v760
  %v813 = vpack.c.b16 %v763, %v762
  %v814 = vpack.c.b16 %v765, %v764
  %v815 = vpack.c.b16 %v767, %v766
  %864 = vmatprep.subr.bf16.mxu0 0
  %865 = vmatpush1.bf16.msra.mxu0 %v768
  %866 = vmatprep.subr.bf16.mxu0 0
  %867 = vmatpush1.bf16.msra.mxu0 %v769
  %868 = vmatprep.subr.bf16.mxu0 0
  %869 = vmatpush1.bf16.msra.mxu0 %v770
  %870 = vmatprep.subr.bf16.mxu0 0
  %871 = vmatpush1.bf16.msra.mxu0 %v771
  %872 = vmatprep.subr.bf16.mxu0 0
  %873 = vmatpush1.bf16.msra.mxu0 %v772
  %874 = vmatprep.subr.bf16.mxu0 0
  %875 = vmatpush1.bf16.msra.mxu0 %v773
  %876 = vmatprep.subr.bf16.mxu0 0
  %877 = vmatpush1.bf16.msra.mxu0 %v774
  %878 = vmatprep.subr.bf16.mxu0 0
  %879 = vmatpush1.bf16.msra.mxu0 %v775
  %880 = vmatprep.subr.bf16.mxu0 0
  %881 = vmatpush1.bf16.msra.mxu0 %v776
  %882 = vmatprep.subr.bf16.mxu0 0
  %883 = vmatpush1.bf16.msra.mxu0 %v777
  %884 = vmatprep.subr.bf16.mxu0 0
  %885 = vmatpush1.bf16.msra.mxu0 %v778
  %886 = vmatprep.subr.bf16.mxu0 0
  %887 = vmatpush1.bf16.msra.mxu0 %v779
  %888 = vmatprep.subr.bf16.mxu0 0
  %889 = vmatpush1.bf16.msra.mxu0 %v780
  %890 = vmatprep.subr.bf16.mxu0 0
  %891 = vmatpush1.bf16.msra.mxu0 %v781
  %892 = vmatprep.subr.bf16.mxu0 0
  %893 = vmatpush1.bf16.msra.mxu0 %v782
  %894 = vmatprep.subr.bf16.mxu0 0
  %895 = vmatpush1.bf16.msra.mxu0 %v783
  %896 = vmatprep.mubr.bf16.mxu0 %v462
  %897 = vmatmul.mubr.bf16.gmra.mrb[0].mxu0 %v461
  %v898 = vpop.f32.mrb[0].mxu0
  %v899 = vadd.f32 %v574, %v898
  %v900 = vpop.f32.mrb[0].mxu0
  %v901 = vpop.f32.mrb[0].mxu0
  %v902 = vadd.f32 %v574, %v901
  %v903 = vpop.f32.mrb[0].mxu0
  %904 = vmatprep.mubr.bf16.mxu0 %v468
  %905 = vmatmul.mubr.bf16.gmra.mrb[0].mxu0 %v467
  %v906 = vpop.f32.mrb[0].mxu0
  %v907 = vadd.f32 %v574, %v906
  %v908 = vpop.f32.mrb[0].mxu0
  %v909 = vpop.f32.mrb[0].mxu0
  %v910 = vpop.f32.mrb[0].mxu0
  %911 = vdwg.mxu0
  %912 = vmatprep.subr.bf16.mxu0 0
  %913 = vmatpush1.bf16.msra.mxu0 %v784
  %914 = vmatprep.subr.bf16.mxu0 0
  %915 = vmatpush1.bf16.msra.mxu0 %v785
  %916 = vmatprep.subr.bf16.mxu0 0
  %917 = vmatpush1.bf16.msra.mxu0 %v786
  %918 = vmatprep.subr.bf16.mxu0 0
  %919 = vmatpush1.bf16.msra.mxu0 %v787
  %920 = vmatprep.subr.bf16.mxu0 0
  %921 = vmatpush1.bf16.msra.mxu0 %v788
  %922 = vmatprep.subr.bf16.mxu0 0
  %923 = vmatpush1.bf16.msra.mxu0 %v789
  %924 = vmatprep.subr.bf16.mxu0 0
  %925 = vmatpush1.bf16.msra.mxu0 %v790
  %926 = vmatprep.subr.bf16.mxu0 0
  %927 = vmatpush1.bf16.msra.mxu0 %v791
  %928 = vmatprep.subr.bf16.mxu0 0
  %929 = vmatpush1.bf16.msra.mxu0 %v792
  %930 = vmatprep.subr.bf16.mxu0 0
  %931 = vmatpush1.bf16.msra.mxu0 %v793
  %932 = vmatprep.subr.bf16.mxu0 0
  %933 = vmatpush1.bf16.msra.mxu0 %v794
  %934 = vmatprep.subr.bf16.mxu0 0
  %935 = vmatpush1.bf16.msra.mxu0 %v795
  %936 = vmatprep.subr.bf16.mxu0 0
  %937 = vmatpush1.bf16.msra.mxu0 %v796
  %938 = vmatprep.subr.bf16.mxu0 0
  %939 = vmatpush1.bf16.msra.mxu0 %v797
  %940 = vmatprep.subr.bf16.mxu0 0
  %941 = vmatpush1.bf16.msra.mxu0 %v798
  %942 = vmatprep.subr.bf16.mxu0 0
  %943 = vmatpush1.bf16.msra.mxu0 %v799
  %944 = vmatprep.mubr.bf16.mxu0 %v464
  %945 = vmatmul.mubr.bf16.gmra.mrb[0].mxu0 %v463
  %v946 = vpop.f32.mrb[0].mxu0
  %v947 = vadd.f32 %v899, %v946
  %v948 = vpop.f32.mrb[0].mxu0
  %v949 = vpop.f32.mrb[0].mxu0
  %v950 = vadd.f32 %v902, %v949
  %v951 = vpop.f32.mrb[0].mxu0
  %952 = vmatprep.mubr.bf16.mxu0 %v470
  %953 = vmatmul.mubr.bf16.gmra.mrb[0].mxu0 %v469
  %v954 = vpop.f32.mrb[0].mxu0
  %v955 = vadd.f32 %v907, %v954
  %v956 = vpop.f32.mrb[0].mxu0
  %v957 = vpop.f32.mrb[0].mxu0
  %v958 = vpop.f32.mrb[0].mxu0
  %959 = vdwg.mxu0
  %960 = vmatprep.subr.bf16.mxu0 0
  %961 = vmatpush1.bf16.msra.mxu0 %v800
  %962 = vmatprep.subr.bf16.mxu0 0
  %963 = vmatpush1.bf16.msra.mxu0 %v801
  %964 = vmatprep.subr.bf16.mxu0 0
  %965 = vmatpush1.bf16.msra.mxu0 %v802
  %966 = vmatprep.subr.bf16.mxu0 0
  %967 = vmatpush1.bf16.msra.mxu0 %v803
  %968 = vmatprep.subr.bf16.mxu0 0
  %969 = vmatpush1.bf16.msra.mxu0 %v804
  %970 = vmatprep.subr.bf16.mxu0 0
  %971 = vmatpush1.bf16.msra.mxu0 %v805
  %972 = vmatprep.subr.bf16.mxu0 0
  %973 = vmatpush1.bf16.msra.mxu0 %v806
  %974 = vmatprep.subr.bf16.mxu0 0
  %975 = vmatpush1.bf16.msra.mxu0 %v807
  %976 = vmatprep.subr.bf16.mxu0 0
  %977 = vmatpush1.bf16.msra.mxu0 %v808
  %978 = vmatprep.subr.bf16.mxu0 0
  %979 = vmatpush1.bf16.msra.mxu0 %v809
  %980 = vmatprep.subr.bf16.mxu0 0
  %981 = vmatpush1.bf16.msra.mxu0 %v810
  %982 = vmatprep.subr.bf16.mxu0 0
  %983 = vmatpush1.bf16.msra.mxu0 %v811
  %984 = vmatprep.subr.bf16.mxu0 0
  %985 = vmatpush1.bf16.msra.mxu0 %v812
  %986 = vmatprep.subr.bf16.mxu0 0
  %987 = vmatpush1.bf16.msra.mxu0 %v813
  %988 = vmatprep.subr.bf16.mxu0 0
  %989 = vmatpush1.bf16.msra.mxu0 %v814
  %990 = vmatprep.subr.bf16.mxu0 0
  %991 = vmatpush1.bf16.msra.mxu0 %v815
  %992 = vmatprep.mubr.bf16.mxu0 %v466
  %993 = vmatmul.mubr.bf16.gmra.mrb[0].mxu0 %v465
  %v994 = vpop.f32.mrb[0].mxu0
  %v995 = vadd.f32 %v947, %v994
  %v996 = vpop.f32.mrb[0].mxu0
  %v997 = vpop.f32.mrb[0].mxu0
  %v998 = vadd.f32 %v950, %v997
  %v999 = vpop.f32.mrb[0].mxu0
  %1000 = vmatprep.mubr.bf16.mxu0 %v472
  %1001 = vmatmul.mubr.bf16.gmra.mrb[0].mxu0 %v471
  %v1002 = vpop.f32.mrb[0].mxu0
  %v1003 = vadd.f32 %v955, %v1002
  %v1004 = vpop.f32.mrb[0].mxu0
  %v1005 = vpop.f32.mrb[0].mxu0
  %v1006 = vpop.f32.mrb[0].mxu0
  %1007 = vdwg.mxu0
  %v1008 = vmax.f32 %v995, 0.0
  %v1009 = vmax.f32 %v998, 0.0
  %v1010 = vmax.f32 %v1003, 0.0
  %v1011 = vpack.c.bf16 %v1009, %v1008
  %v1012 = vpack.c.bf16 %v1010, %v1010
  %v1013 = vld [vmem:[%s6] sm:$0xf]
  %v1014 = vld [vmem:[%s6 + $0x4] sm:$0xf]
  %v1015 = vld [vmem:[%s6 + $0x8] sm:$0xf]
  %v1016 = vld [vmem:[%s6 + $0xc] sm:$0xf]
  %v1017 = vld [vmem:[%s6 + $0x10] sm:$0xf]
  %v1018 = vld [vmem:[%s6 + $0x14] sm:$0xf]
  %v1019 = vld [vmem:[%s6 + $0x18] sm:$0xf]
  %v1020 = vld [vmem:[%s6 + $0x1c] sm:$0xf]
  %v1021 = vld [vmem:[%s7] sm:$0x1]
  %v1023 = vlaneseq
  %v1024 = vshrl.u32 %v1023, 7
  %v1025 = vsub.s32 0, %v1024
  %v1026 = vrot.slane %v1021, %v1025
  %v1036 = vunpack.c.l.b16 %v1013
  %v1037 = vunpack.c.l.b16 %v1014
  %v1038 = vunpack.c.l.b16 %v1015
  %v1039 = vunpack.c.l.b16 %v1016
  %v1040 = vunpack.c.l.b16 %v1017
  %v1041 = vunpack.c.l.b16 %v1018
  %v1042 = vunpack.c.l.b16 %v1019
  %v1043 = vunpack.c.l.b16 %v1020
  %v1044 = vpack.c.b16 %v1037, %v1036
  %v1045 = vpack.c.b16 %v1039, %v1038
  %v1046 = vpack.c.b16 %v1041, %v1040
  %v1047 = vpack.c.b16 %v1043, %v1042
  %vm1052 = vcmask 523264
  %v1054 = vsel %vm1052, %v1011, 0
  %v1057 = vsel %vm1052, %v1012, 0
  %1059 = vmatprep.subr.bf16.mxu0 0
  %1060 = vmatpush1.bf16.msra.mxu0 %v1044
  %1061 = vmatprep.subr.bf16.mxu0 0
  %1062 = vmatpush1.bf16.msra.mxu0 %v1045
  %1063 = vmatprep.subr.bf16.mxu0 0
  %1064 = vmatpush1.bf16.msra.mxu0 %v1046
  %1065 = vmatprep.subr.bf16.mxu0 0
  %1066 = vmatpush1.bf16.msra.mxu0 %v1047
  %1067 = vmatprep.subr.bf16.mxu0 0
  %1068 = vmatpush1.bf16.msra.mxu0 0
  %1069 = vmatprep.subr.bf16.mxu0 0
  %1070 = vmatpush1.bf16.msra.mxu0 0
  %1071 = vmatprep.subr.bf16.mxu0 0
  %1072 = vmatpush1.bf16.msra.mxu0 0
  %1073 = vmatprep.subr.bf16.mxu0 0
  %1074 = vmatpush1.bf16.msra.mxu0 0
  %1075 = vmatprep.subr.bf16.mxu0 0
  %1076 = vmatpush1.bf16.msra.mxu0 0
  %1077 = vmatprep.subr.bf16.mxu0 0
  %1078 = vmatpush1.bf16.msra.mxu0 0
  %1079 = vmatprep.subr.bf16.mxu0 0
  %1080 = vmatpush1.bf16.msra.mxu0 0
  %1081 = vmatprep.subr.bf16.mxu0 0
  %1082 = vmatpush1.bf16.msra.mxu0 0
  %1083 = vmatprep.subr.bf16.mxu0 0
  %1084 = vmatpush1.bf16.msra.mxu0 0
  %1085 = vmatprep.subr.bf16.mxu0 0
  %1086 = vmatpush1.bf16.msra.mxu0 0
  %1087 = vmatprep.subr.bf16.mxu0 0
  %1088 = vmatpush1.bf16.msra.mxu0 0
  %1089 = vmatprep.subr.bf16.mxu0 0
  %1090 = vmatpush1.bf16.msra.mxu0 0
  %1091 = vmatprep.mubr.bf16.mxu0 0
  %1092 = vmatmul.mubr.bf16.gmra.mrb[0].mxu0 %v1054
  %v1093 = vpop.f32.mrb[0].mxu0
  %v1094 = vadd.f32 %v1026, %v1093
  %v1095 = vpop.f32.mrb[0].mxu0
  %v1096 = vpop.f32.mrb[0].mxu0
  %v1097 = vadd.f32 %v1026, %v1096
  %v1098 = vpop.f32.mrb[0].mxu0
  %1099 = vmatprep.mubr.bf16.mxu0 0
  %1100 = vmatmul.mubr.bf16.gmra.mrb[0].mxu0 %v1057
  %v1101 = vpop.f32.mrb[0].mxu0
  %v1102 = vadd.f32 %v1026, %v1101
  %v1103 = vpop.f32.mrb[0].mxu0
  %v1104 = vpop.f32.mrb[0].mxu0
  %v1105 = vpop.f32.mrb[0].mxu0
  %1106 = vdwg.mxu0
  %v1107 = vmax.f32 %v1094, %v1097
  %v1108 = vmax.f32 %v1107, %v1102
  loop: start=0, step=1, limit=8
  $region206: #{tpu_custom_call.1} parent=0 // loop_pre_header
    _
  $region207: #{tpu_custom_call.1} parent=0 // loop_header
    %s1110 = sphi 0, %s1114
    %p1111 = scmp.ge.s32.totalorder %s1110, 8
  $region208: #{tpu_custom_call.1} parent=0 // loop_header_branch
    %1113 = sbr.rel (%p1111) target = $region212
  $region209: #{tpu_custom_call.1} parent=0 // loop_body
    %s1115 = sadd.s32 %s50, %s1110
    %s1116 = sld [smem:[#allocation7 + %s1115]]
    %s1117 = scalar_lea.sflag [#allocation4], 1
    %s1118 = smul.u32 1, 6
    %s1119 = sshll.u32 %s1118, 4
    %1120 = dma.done %s1117, %s1119
    %s1121 = sshll.u32 %s1118, 4
    %1122 = dma.done %s1117, %s1121
  $region210: #{tpu_custom_call.1} parent=0 // loop_footer
    %s1114 = sadd.s32 1, %s1110
  $region211: #{tpu_custom_call.1} parent=0 // loop_footer_branch
    %1109 = sbr.rel target = $region207
  $region212: #{tpu_custom_call.1} parent=0 // loop_exit
    _
  %v1123 = vld [vmem:[#allocation3] sm:$0xff]
  %v1124 = vld [vmem:[#allocation3 + $0x8] sm:$0xff]
  %v1125 = vld [vmem:[#allocation3 + $0x10] sm:$0xff]
  %v1126 = vld [vmem:[#allocation3 + $0x18] sm:$0xff]
  %v1127 = vld [vmem:[#allocation3 + $0x20] sm:$0xff]
  %v1128 = vld [vmem:[#allocation3 + $0x28] sm:$0xff]
  %v1129 = vld [vmem:[#allocation3 + $0x30] sm:$0xff]
  %v1130 = vld [vmem:[#allocation3 + $0x38] sm:$0xff]
  %v1131 = vld [vmem:[#allocation3 + $0x40] sm:$0xff]
  %v1132 = vld [vmem:[#allocation3 + $0x48] sm:$0xff]
  %v1133 = vld [vmem:[#allocation3 + $0x50] sm:$0xff]
  %v1134 = vld [vmem:[#allocation3 + $0x58] sm:$0xff]
  %v1135 = vpack.c.bf16 %v1129, %v1123
  %v1136 = vpack.c.bf16 %v1130, %v1124
  %v1137 = vpack.c.bf16 %v1131, %v1125
  %v1138 = vpack.c.bf16 %v1132, %v1126
  %v1139 = vpack.c.bf16 %v1133, %v1127
  %v1140 = vpack.c.bf16 %v1134, %v1128
  %v1141 = vld [vmem:[%s8] sm:$0xf]
  %v1142 = vld [vmem:[%s8 + $0x4] sm:$0xf]
  %v1143 = vld [vmem:[%s8 + $0x8] sm:$0xf]
  %v1144 = vld [vmem:[%s8 + $0xc] sm:$0xf]
  %v1145 = vld [vmem:[%s8 + $0x10] sm:$0xf]
  %v1146 = vld [vmem:[%s8 + $0x14] sm:$0xf]
  %v1147 = vld [vmem:[%s8 + $0x18] sm:$0xf]
  %v1148 = vld [vmem:[%s8 + $0x1c] sm:$0xf]
  %v1149 = vld [vmem:[%s8 + $0x20] sm:$0xf]
  %v1150 = vld [vmem:[%s8 + $0x24] sm:$0xf]
  %v1151 = vld [vmem:[%s8 + $0x28] sm:$0xf]
  %v1152 = vld [vmem:[%s8 + $0x2c] sm:$0xf]
  %v1153 = vld [vmem:[%s8 + $0x30] sm:$0xf]
  %v1154 = vld [vmem:[%s8 + $0x34] sm:$0xf]
  %v1155 = vld [vmem:[%s8 + $0x38] sm:$0xf]
  %v1156 = vld [vmem:[%s8 + $0x3c] sm:$0xf]
  %v1157 = vld [vmem:[%s8 + $0x40] sm:$0xf]
  %v1158 = vld [vmem:[%s8 + $0x44] sm:$0xf]
  %v1159 = vld [vmem:[%s8 + $0x48] sm:$0xf]
  %v1160 = vld [vmem:[%s8 + $0x4c] sm:$0xf]
  %v1161 = vld [vmem:[%s8 + $0x50] sm:$0xf]
  %v1162 = vld [vmem:[%s8 + $0x54] sm:$0xf]
  %v1163 = vld [vmem:[%s8 + $0x58] sm:$0xf]
  %v1164 = vld [vmem:[%s8 + $0x5c] sm:$0xf]
  %v1165 = vld [vmem:[%s8 + $0x60] sm:$0xf]
  %v1166 = vld [vmem:[%s8 + $0x64] sm:$0xf]
  %v1167 = vld [vmem:[%s8 + $0x68] sm:$0xf]
  %v1168 = vld [vmem:[%s8 + $0x6c] sm:$0xf]
  %v1169 = vld [vmem:[%s8 + $0x70] sm:$0xf]
  %v1170 = vld [vmem:[%s8 + $0x74] sm:$0xf]
  %v1171 = vld [vmem:[%s8 + $0x78] sm:$0xf]
  %v1172 = vld [vmem:[%s8 + $0x7c] sm:$0xf]
  %v1173 = vld [vmem:[%s8 + $0x80] sm:$0xf]
  %v1174 = vld [vmem:[%s8 + $0x84] sm:$0xf]
  %v1175 = vld [vmem:[%s8 + $0x88] sm:$0xf]
  %v1176 = vld [vmem:[%s8 + $0x8c] sm:$0xf]
  %v1177 = vld [vmem:[%s8 + $0x90] sm:$0xf]
  %v1178 = vld [vmem:[%s8 + $0x94] sm:$0xf]
  %v1179 = vld [vmem:[%s8 + $0x98] sm:$0xf]
  %v1180 = vld [vmem:[%s8 + $0x9c] sm:$0xf]
  %v1181 = vld [vmem:[%s8 + $0xa0] sm:$0xf]
  %v1182 = vld [vmem:[%s8 + $0xa4] sm:$0xf]
  %v1183 = vld [vmem:[%s8 + $0xa8] sm:$0xf]
  %v1184 = vld [vmem:[%s8 + $0xac] sm:$0xf]
  %v1185 = vld [vmem:[%s8 + $0xb0] sm:$0xf]
  %v1186 = vld [vmem:[%s8 + $0xb4] sm:$0xf]
  %v1187 = vld [vmem:[%s8 + $0xb8] sm:$0xf]
  %v1188 = vld [vmem:[%s8 + $0xbc] sm:$0xf]
  %v1189 = vld [vmem:[%s8 + $0xc0] sm:$0xf]
  %v1190 = vld [vmem:[%s8 + $0xc4] sm:$0xf]
  %v1191 = vld [vmem:[%s8 + $0xc8] sm:$0xf]
  %v1192 = vld [vmem:[%s8 + $0xcc] sm:$0xf]
  %v1193 = vld [vmem:[%s8 + $0xd0] sm:$0xf]
  %v1194 = vld [vmem:[%s8 + $0xd4] sm:$0xf]
  %v1195 = vld [vmem:[%s8 + $0xd8] sm:$0xf]
  %v1196 = vld [vmem:[%s8 + $0xdc] sm:$0xf]
  %v1197 = vld [vmem:[%s8 + $0xe0] sm:$0xf]
  %v1198 = vld [vmem:[%s8 + $0xe4] sm:$0xf]
  %v1199 = vld [vmem:[%s8 + $0xe8] sm:$0xf]
  %v1200 = vld [vmem:[%s8 + $0xec] sm:$0xf]
  %v1201 = vld [vmem:[%s8 + $0xf0] sm:$0xf]
  %v1202 = vld [vmem:[%s8 + $0xf4] sm:$0xf]
  %v1203 = vld [vmem:[%s8 + $0xf8] sm:$0xf]
  %v1204 = vld [vmem:[%s8 + $0xfc] sm:$0xf]
  %v1205 = vld [vmem:[%s8 + $0x100] sm:$0xf]
  %v1206 = vld [vmem:[%s8 + $0x104] sm:$0xf]
  %v1207 = vld [vmem:[%s8 + $0x108] sm:$0xf]
  %v1208 = vld [vmem:[%s8 + $0x10c] sm:$0xf]
  %v1209 = vld [vmem:[%s8 + $0x110] sm:$0xf]
  %v1210 = vld [vmem:[%s8 + $0x114] sm:$0xf]
  %v1211 = vld [vmem:[%s8 + $0x118] sm:$0xf]
  %v1212 = vld [vmem:[%s8 + $0x11c] sm:$0xf]
  %v1213 = vld [vmem:[%s8 + $0x120] sm:$0xf]
  %v1214 = vld [vmem:[%s8 + $0x124] sm:$0xf]
  %v1215 = vld [vmem:[%s8 + $0x128] sm:$0xf]
  %v1216 = vld [vmem:[%s8 + $0x12c] sm:$0xf]
  %v1217 = vld [vmem:[%s8 + $0x130] sm:$0xf]
  %v1218 = vld [vmem:[%s8 + $0x134] sm:$0xf]
  %v1219 = vld [vmem:[%s8 + $0x138] sm:$0xf]
  %v1220 = vld [vmem:[%s8 + $0x13c] sm:$0xf]
  %v1221 = vld [vmem:[%s8 + $0x140] sm:$0xf]
  %v1222 = vld [vmem:[%s8 + $0x144] sm:$0xf]
  %v1223 = vld [vmem:[%s8 + $0x148] sm:$0xf]
  %v1224 = vld [vmem:[%s8 + $0x14c] sm:$0xf]
  %v1225 = vld [vmem:[%s8 + $0x150] sm:$0xf]
  %v1226 = vld [vmem:[%s8 + $0x154] sm:$0xf]
  %v1227 = vld [vmem:[%s8 + $0x158] sm:$0xf]
  %v1228 = vld [vmem:[%s8 + $0x15c] sm:$0xf]
  %v1229 = vld [vmem:[%s8 + $0x160] sm:$0xf]
  %v1230 = vld [vmem:[%s8 + $0x164] sm:$0xf]
  %v1231 = vld [vmem:[%s8 + $0x168] sm:$0xf]
  %v1232 = vld [vmem:[%s8 + $0x16c] sm:$0xf]
  %v1233 = vld [vmem:[%s8 + $0x170] sm:$0xf]
  %v1234 = vld [vmem:[%s8 + $0x174] sm:$0xf]
  %v1235 = vld [vmem:[%s8 + $0x178] sm:$0xf]
  %v1236 = vld [vmem:[%s8 + $0x17c] sm:$0xf]
  %v1237 = vld [vmem:[%s9] sm:$0x1]
  %v1239 = vlaneseq
  %v1240 = vshrl.u32 %v1239, 7
  %v1241 = vsub.s32 0, %v1240
  %v1242 = vrot.slane %v1237, %v1241
  %v1340 = vunpack.c.l.b16 %v1141
  %v1341 = vunpack.c.l.b16 %v1142
  %v1342 = vunpack.c.l.b16 %v1143
  %v1343 = vunpack.c.l.b16 %v1144
  %v1344 = vunpack.c.l.b16 %v1145
  %v1345 = vunpack.c.l.b16 %v1146
  %v1346 = vunpack.c.l.b16 %v1147
  %v1347 = vunpack.c.l.b16 %v1148
  %v1348 = vunpack.c.l.b16 %v1149
  %v1349 = vunpack.c.l.b16 %v1150
  %v1350 = vunpack.c.l.b16 %v1151
  %v1351 = vunpack.c.l.b16 %v1152
  %v1352 = vunpack.c.l.b16 %v1153
  %v1353 = vunpack.c.l.b16 %v1154
  %v1354 = vunpack.c.l.b16 %v1155
  %v1355 = vunpack.c.l.b16 %v1156
  %v1356 = vunpack.c.l.b16 %v1157
  %v1357 = vunpack.c.l.b16 %v1158
  %v1358 = vunpack.c.l.b16 %v1159
  %v1359 = vunpack.c.l.b16 %v1160
  %v1360 = vunpack.c.l.b16 %v1161
  %v1361 = vunpack.c.l.b16 %v1162
  %v1362 = vunpack.c.l.b16 %v1163
  %v1363 = vunpack.c.l.b16 %v1164
  %v1364 = vunpack.c.l.b16 %v1165
  %v1365 = vunpack.c.l.b16 %v1166
  %v1366 = vunpack.c.l.b16 %v1167
  %v1367 = vunpack.c.l.b16 %v1168
  %v1368 = vunpack.c.l.b16 %v1169
  %v1369 = vunpack.c.l.b16 %v1170
  %v1370 = vunpack.c.l.b16 %v1171
  %v1371 = vunpack.c.l.b16 %v1172
  %v1372 = vunpack.c.l.b16 %v1173
  %v1373 = vunpack.c.l.b16 %v1174
  %v1374 = vunpack.c.l.b16 %v1175
  %v1375 = vunpack.c.l.b16 %v1176
  %v1376 = vunpack.c.l.b16 %v1177
  %v1377 = vunpack.c.l.b16 %v1178
  %v1378 = vunpack.c.l.b16 %v1179
  %v1379 = vunpack.c.l.b16 %v1180
  %v1380 = vunpack.c.l.b16 %v1181
  %v1381 = vunpack.c.l.b16 %v1182
  %v1382 = vunpack.c.l.b16 %v1183
  %v1383 = vunpack.c.l.b16 %v1184
  %v1384 = vunpack.c.l.b16 %v1185
  %v1385 = vunpack.c.l.b16 %v1186
  %v1386 = vunpack.c.l.b16 %v1187
  %v1387 = vunpack.c.l.b16 %v1188
  %v1388 = vunpack.c.l.b16 %v1189
  %v1389 = vunpack.c.l.b16 %v1190
  %v1390 = vunpack.c.l.b16 %v1191
  %v1391 = vunpack.c.l.b16 %v1192
  %v1392 = vunpack.c.l.b16 %v1193
  %v1393 = vunpack.c.l.b16 %v1194
  %v1394 = vunpack.c.l.b16 %v1195
  %v1395 = vunpack.c.l.b16 %v1196
  %v1396 = vunpack.c.l.b16 %v1197
  %v1397 = vunpack.c.l.b16 %v1198
  %v1398 = vunpack.c.l.b16 %v1199
  %v1399 = vunpack.c.l.b16 %v1200
  %v1400 = vunpack.c.l.b16 %v1201
  %v1401 = vunpack.c.l.b16 %v1202
  %v1402 = vunpack.c.l.b16 %v1203
  %v1403 = vunpack.c.l.b16 %v1204
  %v1404 = vunpack.c.l.b16 %v1205
  %v1405 = vunpack.c.l.b16 %v1206
  %v1406 = vunpack.c.l.b16 %v1207
  %v1407 = vunpack.c.l.b16 %v1208
  %v1408 = vunpack.c.l.b16 %v1209
  %v1409 = vunpack.c.l.b16 %v1210
  %v1410 = vunpack.c.l.b16 %v1211
  %v1411 = vunpack.c.l.b16 %v1212
  %v1412 = vunpack.c.l.b16 %v1213
  %v1413 = vunpack.c.l.b16 %v1214
  %v1414 = vunpack.c.l.b16 %v1215
  %v1415 = vunpack.c.l.b16 %v1216
  %v1416 = vunpack.c.l.b16 %v1217
  %v1417 = vunpack.c.l.b16 %v1218
  %v1418 = vunpack.c.l.b16 %v1219
  %v1419 = vunpack.c.l.b16 %v1220
  %v1420 = vunpack.c.l.b16 %v1221
  %v1421 = vunpack.c.l.b16 %v1222
  %v1422 = vunpack.c.l.b16 %v1223
  %v1423 = vunpack.c.l.b16 %v1224
  %v1424 = vunpack.c.l.b16 %v1225
  %v1425 = vunpack.c.l.b16 %v1226
  %v1426 = vunpack.c.l.b16 %v1227
  %v1427 = vunpack.c.l.b16 %v1228
  %v1428 = vunpack.c.l.b16 %v1229
  %v1429 = vunpack.c.l.b16 %v1230
  %v1430 = vunpack.c.l.b16 %v1231
  %v1431 = vunpack.c.l.b16 %v1232
  %v1432 = vunpack.c.l.b16 %v1233
  %v1433 = vunpack.c.l.b16 %v1234
  %v1434 = vunpack.c.l.b16 %v1235
  %v1435 = vunpack.c.l.b16 %v1236
  %v1436 = vpack.c.b16 %v1341, %v1340
  %v1437 = vpack.c.b16 %v1343, %v1342
  %v1438 = vpack.c.b16 %v1345, %v1344
  %v1439 = vpack.c.b16 %v1347, %v1346
  %v1440 = vpack.c.b16 %v1349, %v1348
  %v1441 = vpack.c.b16 %v1351, %v1350
  %v1442 = vpack.c.b16 %v1353, %v1352
  %v1443 = vpack.c.b16 %v1355, %v1354
  %v1444 = vpack.c.b16 %v1357, %v1356
  %v1445 = vpack.c.b16 %v1359, %v1358
  %v1446 = vpack.c.b16 %v1361, %v1360
  %v1447 = vpack.c.b16 %v1363, %v1362
  %v1448 = vpack.c.b16 %v1365, %v1364
  %v1449 = vpack.c.b16 %v1367, %v1366
  %v1450 = vpack.c.b16 %v1369, %v1368
  %v1451 = vpack.c.b16 %v1371, %v1370
  %v1452 = vpack.c.b16 %v1373, %v1372
  %v1453 = vpack.c.b16 %v1375, %v1374
  %v1454 = vpack.c.b16 %v1377, %v1376
  %v1455 = vpack.c.b16 %v1379, %v1378
  %v1456 = vpack.c.b16 %v1381, %v1380
  %v1457 = vpack.c.b16 %v1383, %v1382
  %v1458 = vpack.c.b16 %v1385, %v1384
  %v1459 = vpack.c.b16 %v1387, %v1386
  %v1460 = vpack.c.b16 %v1389, %v1388
  %v1461 = vpack.c.b16 %v1391, %v1390
  %v1462 = vpack.c.b16 %v1393, %v1392
  %v1463 = vpack.c.b16 %v1395, %v1394
  %v1464 = vpack.c.b16 %v1397, %v1396
  %v1465 = vpack.c.b16 %v1399, %v1398
  %v1466 = vpack.c.b16 %v1401, %v1400
  %v1467 = vpack.c.b16 %v1403, %v1402
  %v1468 = vpack.c.b16 %v1405, %v1404
  %v1469 = vpack.c.b16 %v1407, %v1406
  %v1470 = vpack.c.b16 %v1409, %v1408
  %v1471 = vpack.c.b16 %v1411, %v1410
  %v1472 = vpack.c.b16 %v1413, %v1412
  %v1473 = vpack.c.b16 %v1415, %v1414
  %v1474 = vpack.c.b16 %v1417, %v1416
  %v1475 = vpack.c.b16 %v1419, %v1418
  %v1476 = vpack.c.b16 %v1421, %v1420
  %v1477 = vpack.c.b16 %v1423, %v1422
  %v1478 = vpack.c.b16 %v1425, %v1424
  %v1479 = vpack.c.b16 %v1427, %v1426
  %v1480 = vpack.c.b16 %v1429, %v1428
  %v1481 = vpack.c.b16 %v1431, %v1430
  %v1482 = vpack.c.b16 %v1433, %v1432
  %v1483 = vpack.c.b16 %v1435, %v1434
  %1532 = vmatprep.subr.bf16.mxu0 0
  %1533 = vmatpush1.bf16.msra.mxu0 %v1436
  %1534 = vmatprep.subr.bf16.mxu0 0
  %1535 = vmatpush1.bf16.msra.mxu0 %v1437
  %1536 = vmatprep.subr.bf16.mxu0 0
  %1537 = vmatpush1.bf16.msra.mxu0 %v1438
  %1538 = vmatprep.subr.bf16.mxu0 0
  %1539 = vmatpush1.bf16.msra.mxu0 %v1439
  %1540 = vmatprep.subr.bf16.mxu0 0
  %1541 = vmatpush1.bf16.msra.mxu0 %v1440
  %1542 = vmatprep.subr.bf16.mxu0 0
  %1543 = vmatpush1.bf16.msra.mxu0 %v1441
  %1544 = vmatprep.subr.bf16.mxu0 0
  %1545 = vmatpush1.bf16.msra.mxu0 %v1442
  %1546 = vmatprep.subr.bf16.mxu0 0
  %1547 = vmatpush1.bf16.msra.mxu0 %v1443
  %1548 = vmatprep.subr.bf16.mxu0 0
  %1549 = vmatpush1.bf16.msra.mxu0 %v1444
  %1550 = vmatprep.subr.bf16.mxu0 0
  %1551 = vmatpush1.bf16.msra.mxu0 %v1445
  %1552 = vmatprep.subr.bf16.mxu0 0
  %1553 = vmatpush1.bf16.msra.mxu0 %v1446
  %1554 = vmatprep.subr.bf16.mxu0 0
  %1555 = vmatpush1.bf16.msra.mxu0 %v1447
  %1556 = vmatprep.subr.bf16.mxu0 0
  %1557 = vmatpush1.bf16.msra.mxu0 %v1448
  %1558 = vmatprep.subr.bf16.mxu0 0
  %1559 = vmatpush1.bf16.msra.mxu0 %v1449
  %1560 = vmatprep.subr.bf16.mxu0 0
  %1561 = vmatpush1.bf16.msra.mxu0 %v1450
  %1562 = vmatprep.subr.bf16.mxu0 0
  %1563 = vmatpush1.bf16.msra.mxu0 %v1451
  %1564 = vmatprep.mubr.bf16.mxu0 %v1136
  %1565 = vmatmul.mubr.bf16.gmra.mrb[0].mxu0 %v1135
  %v1566 = vpop.f32.mrb[0].mxu0
  %v1567 = vadd.f32 %v1242, %v1566
  %v1568 = vpop.f32.mrb[0].mxu0
  %v1569 = vpop.f32.mrb[0].mxu0
  %v1570 = vadd.f32 %v1242, %v1569
  %v1571 = vpop.f32.mrb[0].mxu0
  %1572 = vdwg.mxu0
  %1573 = vmatprep.subr.bf16.mxu0 0
  %1574 = vmatpush1.bf16.msra.mxu0 %v1452
  %1575 = vmatprep.subr.bf16.mxu0 0
  %1576 = vmatpush1.bf16.msra.mxu0 %v1453
  %1577 = vmatprep.subr.bf16.mxu0 0
  %1578 = vmatpush1.bf16.msra.mxu0 %v1454
  %1579 = vmatprep.subr.bf16.mxu0 0
  %1580 = vmatpush1.bf16.msra.mxu0 %v1455
  %1581 = vmatprep.subr.bf16.mxu0 0
  %1582 = vmatpush1.bf16.msra.mxu0 %v1456
  %1583 = vmatprep.subr.bf16.mxu0 0
  %1584 = vmatpush1.bf16.msra.mxu0 %v1457
  %1585 = vmatprep.subr.bf16.mxu0 0
  %1586 = vmatpush1.bf16.msra.mxu0 %v1458
  %1587 = vmatprep.subr.bf16.mxu0 0
  %1588 = vmatpush1.bf16.msra.mxu0 %v1459
  %1589 = vmatprep.subr.bf16.mxu0 0
  %1590 = vmatpush1.bf16.msra.mxu0 %v1460
  %1591 = vmatprep.subr.bf16.mxu0 0
  %1592 = vmatpush1.bf16.msra.mxu0 %v1461
  %1593 = vmatprep.subr.bf16.mxu0 0
  %1594 = vmatpush1.bf16.msra.mxu0 %v1462
  %1595 = vmatprep.subr.bf16.mxu0 0
  %1596 = vmatpush1.bf16.msra.mxu0 %v1463
  %1597 = vmatprep.subr.bf16.mxu0 0
  %1598 = vmatpush1.bf16.msra.mxu0 %v1464
  %1599 = vmatprep.subr.bf16.mxu0 0
  %1600 = vmatpush1.bf16.msra.mxu0 %v1465
  %1601 = vmatprep.subr.bf16.mxu0 0
  %1602 = vmatpush1.bf16.msra.mxu0 %v1466
  %1603 = vmatprep.subr.bf16.mxu0 0
  %1604 = vmatpush1.bf16.msra.mxu0 %v1467
  %1605 = vmatprep.mubr.bf16.mxu0 %v1138
  %1606 = vmatmul.mubr.bf16.gmra.mrb[0].mxu0 %v1137
  %v1607 = vpop.f32.mrb[0].mxu0
  %v1608 = vadd.f32 %v1567, %v1607
  %v1609 = vpop.f32.mrb[0].mxu0
  %v1610 = vpop.f32.mrb[0].mxu0
  %v1611 = vadd.f32 %v1570, %v1610
  %v1612 = vpop.f32.mrb[0].mxu0
  %1613 = vdwg.mxu0
  %1614 = vmatprep.subr.bf16.mxu0 0
  %1615 = vmatpush1.bf16.msra.mxu0 %v1468
  %1616 = vmatprep.subr.bf16.mxu0 0
  %1617 = vmatpush1.bf16.msra.mxu0 %v1469
  %1618 = vmatprep.subr.bf16.mxu0 0
  %1619 = vmatpush1.bf16.msra.mxu0 %v1470
  %1620 = vmatprep.subr.bf16.mxu0 0
  %1621 = vmatpush1.bf16.msra.mxu0 %v1471
  %1622 = vmatprep.subr.bf16.mxu0 0
  %1623 = vmatpush1.bf16.msra.mxu0 %v1472
  %1624 = vmatprep.subr.bf16.mxu0 0
  %1625 = vmatpush1.bf16.msra.mxu0 %v1473
  %1626 = vmatprep.subr.bf16.mxu0 0
  %1627 = vmatpush1.bf16.msra.mxu0 %v1474
  %1628 = vmatprep.subr.bf16.mxu0 0
  %1629 = vmatpush1.bf16.msra.mxu0 %v1475
  %1630 = vmatprep.subr.bf16.mxu0 0
  %1631 = vmatpush1.bf16.msra.mxu0 %v1476
  %1632 = vmatprep.subr.bf16.mxu0 0
  %1633 = vmatpush1.bf16.msra.mxu0 %v1477
  %1634 = vmatprep.subr.bf16.mxu0 0
  %1635 = vmatpush1.bf16.msra.mxu0 %v1478
  %1636 = vmatprep.subr.bf16.mxu0 0
  %1637 = vmatpush1.bf16.msra.mxu0 %v1479
  %1638 = vmatprep.subr.bf16.mxu0 0
  %1639 = vmatpush1.bf16.msra.mxu0 %v1480
  %1640 = vmatprep.subr.bf16.mxu0 0
  %1641 = vmatpush1.bf16.msra.mxu0 %v1481
  %1642 = vmatprep.subr.bf16.mxu0 0
  %1643 = vmatpush1.bf16.msra.mxu0 %v1482
  %1644 = vmatprep.subr.bf16.mxu0 0
  %1645 = vmatpush1.bf16.msra.mxu0 %v1483
  %1646 = vmatprep.mubr.bf16.mxu0 %v1140
  %1647 = vmatmul.mubr.bf16.gmra.mrb[0].mxu0 %v1139
  %v1648 = vpop.f32.mrb[0].mxu0
  %v1649 = vadd.f32 %v1608, %v1648
  %v1650 = vpop.f32.mrb[0].mxu0
  %v1651 = vpop.f32.mrb[0].mxu0
  %v1652 = vadd.f32 %v1611, %v1651
  %v1653 = vpop.f32.mrb[0].mxu0
  %1654 = vdwg.mxu0
  %v1655 = vmax.f32 %v1649, 0.0
  %v1656 = vmax.f32 %v1652, 0.0
  %v1657 = vpack.c.bf16 %v1656, %v1655
  %v1658 = vld [vmem:[%s10] sm:$0xf]
  %v1659 = vld [vmem:[%s10 + $0x4] sm:$0xf]
  %v1660 = vld [vmem:[%s10 + $0x8] sm:$0xf]
  %v1661 = vld [vmem:[%s10 + $0xc] sm:$0xf]
  %v1662 = vld [vmem:[%s10 + $0x10] sm:$0xf]
  %v1663 = vld [vmem:[%s10 + $0x14] sm:$0xf]
  %v1664 = vld [vmem:[%s10 + $0x18] sm:$0xf]
  %v1665 = vld [vmem:[%s10 + $0x1c] sm:$0xf]
  %v1666 = vld [vmem:[%s11] sm:$0x1]
  %v1668 = vlaneseq
  %v1669 = vshrl.u32 %v1668, 7
  %v1670 = vsub.s32 0, %v1669
  %v1671 = vrot.slane %v1666, %v1670
  %v1681 = vunpack.c.l.b16 %v1658
  %v1682 = vunpack.c.l.b16 %v1659
  %v1683 = vunpack.c.l.b16 %v1660
  %v1684 = vunpack.c.l.b16 %v1661
  %v1685 = vunpack.c.l.b16 %v1662
  %v1686 = vunpack.c.l.b16 %v1663
  %v1687 = vunpack.c.l.b16 %v1664
  %v1688 = vunpack.c.l.b16 %v1665
  %v1689 = vpack.c.b16 %v1682, %v1681
  %v1690 = vpack.c.b16 %v1684, %v1683
  %v1691 = vpack.c.b16 %v1686, %v1685
  %v1692 = vpack.c.b16 %v1688, %v1687
  %v1698 = vsel %vm1052, %v1657, 0
  %1700 = vmatprep.subr.bf16.mxu0 0
  %1701 = vmatpush1.bf16.msra.mxu0 %v1689
  %1702 = vmatprep.subr.bf16.mxu0 0
  %1703 = vmatpush1.bf16.msra.mxu0 %v1690
  %1704 = vmatprep.subr.bf16.mxu0 0
  %1705 = vmatpush1.bf16.msra.mxu0 %v1691
  %1706 = vmatprep.subr.bf16.mxu0 0
  %1707 = vmatpush1.bf16.msra.mxu0 %v1692
  %1708 = vmatprep.subr.bf16.mxu0 0
  %1709 = vmatpush1.bf16.msra.mxu0 0
  %1710 = vmatprep.subr.bf16.mxu0 0
  %1711 = vmatpush1.bf16.msra.mxu0 0
  %1712 = vmatprep.subr.bf16.mxu0 0
  %1713 = vmatpush1.bf16.msra.mxu0 0
  %1714 = vmatprep.subr.bf16.mxu0 0
  %1715 = vmatpush1.bf16.msra.mxu0 0
  %1716 = vmatprep.subr.bf16.mxu0 0
  %1717 = vmatpush1.bf16.msra.mxu0 0
  %1718 = vmatprep.subr.bf16.mxu0 0
  %1719 = vmatpush1.bf16.msra.mxu0 0
  %1720 = vmatprep.subr.bf16.mxu0 0
  %1721 = vmatpush1.bf16.msra.mxu0 0
  %1722 = vmatprep.subr.bf16.mxu0 0
  %1723 = vmatpush1.bf16.msra.mxu0 0
  %1724 = vmatprep.subr.bf16.mxu0 0
  %1725 = vmatpush1.bf16.msra.mxu0 0
  %1726 = vmatprep.subr.bf16.mxu0 0
  %1727 = vmatpush1.bf16.msra.mxu0 0
  %1728 = vmatprep.subr.bf16.mxu0 0
  %1729 = vmatpush1.bf16.msra.mxu0 0
  %1730 = vmatprep.subr.bf16.mxu0 0
  %1731 = vmatpush1.bf16.msra.mxu0 0
  %1732 = vmatprep.mubr.bf16.mxu0 0
  %1733 = vmatmul.mubr.bf16.gmra.mrb[0].mxu0 %v1698
  %v1734 = vpop.f32.mrb[0].mxu0
  %v1735 = vadd.f32 %v1671, %v1734
  %v1736 = vpop.f32.mrb[0].mxu0
  %v1737 = vpop.f32.mrb[0].mxu0
  %v1738 = vadd.f32 %v1671, %v1737
  %v1739 = vpop.f32.mrb[0].mxu0
  %1740 = vdwg.mxu0
  %v1741 = vmax.f32 %v1735, %v1738
  %v1742 = vmul.f32 %v1108, %v1741
  %vm1743 = vcmask 261120
  %v1744 = vsel %vm1743, %v1742, 0.0
  %1745 = vadd.xlane.f32.xlu0 %v1744
  %v1746 = vpop.xlane.xlu0 %1745
  %v1747 = vld [vmem:[%s12] sm:$0xff]
  %v1748 = vadd.f32 %v1746, %v1747
  %v1749 = vld [vmem:[%s13] sm:$0xff]
  %v1750 = vadd.f32 %v1748, %v1749
  %vm1751 = vcmask 7168
  %1752 = vst.msk [vmem:[%s14] sm:$0xff] %vm1751, %v1750
  // Predicated region
  $region213: #{tpu_custom_call.1} parent=0 // pred_check
    _
  $region214: #{tpu_custom_call.1} parent=0 // pred_check_branch
    %1754 = sbr.rel (0) target = $region216
  $region215: #{tpu_custom_call.1} parent=0 // pred_region
    _
  $region216: #{tpu_custom_call.1} parent=0 // pred_fallthru
    _
  // Predicated region
  $region217: #{tpu_custom_call.1} parent=0 // pred_check
    _
  $region218: #{tpu_custom_call.1} parent=0 // pred_check_branch
    %1756 = sbr.rel (0) target = $region220
  $region219: #{tpu_custom_call.1} parent=0 // pred_region
    _
  $region220: #{tpu_custom_call.1} parent=0 // pred_fallthru
    _
  %1757 = vsyncmov [#allocation4]
  %s1758 = vpop.sfrf %1757
  %p1759 = scmp.eq.s32.totalorder %s1758, 0
  %p1760 = pneg %p1759
  %1762 = shalt.err (%p1760)
  %s1763 = scalar_lea.sflag [#allocation4], 1
  %1764 = vsyncmov %s1763
  %s1765 = vpop.sfrf %1764
  %p1766 = scmp.eq.s32.totalorder %s1765, 0
  %p1767 = pneg %p1766
  %1769 = shalt.err (%p1767)

</llo_original>
